<compile_context>
chip_gen: v6e
topology: v6e:2x2x1
jax: 0.10.0
libtpu: 0.0.40
codegen_flags: <defaults>
</compile_context>

<pallas_src>
import functools

import jax
import jax.numpy as jnp
from jax import lax
from jax.experimental import pallas as pl
from jax.experimental.pallas import tpu as pltpu

_HAS_PL_RECIP = hasattr(pl, "reciprocal")


# ----------------------------- in-kernel math -----------------------------

def _gelu_erf(x):
    # PyTorch nn.GELU() default = exact-erf formulation.  erf via the Abramowitz &
    # Stegun 7.1.26 approximation (|err| < 1.5e-7); exp and the reciprocal land on the
    # EUP, only the small polynomial stays on the VPU.
    a1, a2, a3, a4, a5 = 0.254829592, -0.284496736, 1.421413741, -1.453152027, 1.061405429
    p = 0.3275911
    u = x * 0.7071067811865476
    au = jnp.abs(u)
    sgn = jnp.where(u >= 0.0, 1.0, -1.0)
    den = 1.0 + p * au
    t = pl.reciprocal(den, approx=True) if _HAS_PL_RECIP else 1.0 / den
    poly = ((((a5 * t + a4) * t + a3) * t + a2) * t + a1) * t
    erf = sgn * (1.0 - poly * jnp.exp(-au * au))
    return 0.5 * x * (1.0 + erf)


def _downsample_kernel(Th, Wo, d_in, d_out,
                       xm_ref, xh_ref, w1_ref, sh1_ref, w2_ref, sh2_ref, o_ref):
    """One (batch, output-row-tile) grid step of the fused Downsample.

    xm_ref : (2*Th, Wo, 2*D_in)  input rows 2*i0 .. 2*i0+2*Th-1, free column-pair view
    xh_ref : (Wo, 2*D_in)        halo input row 2*i0-1 (clamped/garbage on the first tile)
    w1_ref : (4*D_in, 4*D_out)   block-diag 1x1 conv weight (BN1 scale folded)
    sh1_ref: (1, 4*D_out)        BN1 shift (tiled x4), f32
    w2_ref : (4, 4*D_out, D_out) super-pixel packing of the 3x3/s2 conv (BN2 scale folded)
    sh2_ref: (1, D_out)          BN2 shift, f32
    o_ref  : (Th, Wo, D_out)     output rows i0 .. i0+Th-1
    """
    Ws = Wo + 1
    M1 = (Th + 1) * Ws
    TW = Th * Ws
    f32 = jnp.float32

    # ---- in-VMEM super-pixel assembly (no strided loads, no HBM intermediates) ----
    # Flat row m = rs*Ws + cs holds, in its 4*D_in lanes (q = 2*rp + cp), input pixels
    # (2*(i0+rs-1)+rp, 2*(cs-1)+cp): natural 2x2 pixel blocks arranged so the conv's
    # "-1" padding offset turns into a zero super-column (cs == 0) and, on the first
    # row tile only, a zero first super-row.
    zrow_pad = jnp.zeros((1, 4 * d_in), xm_ref.dtype)      # left-pad super-column entry
    zrow_a = jnp.zeros((Wo, 2 * d_in), xm_ref.dtype)       # rp=0 half of the halo super-row
    pieces = []
    for rs in range(Th + 1):
        if rs == 0:
            u_a = zrow_a             # input row 2*i0-2: never hit by a nonzero 3x3 tap
            u_b = xh_ref[...]        # input row 2*i0-1 (top halo; masked on the first tile)
        else:
            u_a = xm_ref[2 * rs - 2]
            u_b = xm_ref[2 * rs - 1]
        pieces.append(zrow_pad)
        pieces.append(jnp.concatenate([u_a, u_b], axis=1))
    xsd = jnp.concatenate(pieces, axis=0)                   # (M1, 4*D_in)

    # ---- stage 1: 1x1 conv (+ folded BN) + GELU, one GEMM over the whole tile ----
    z = jnp.dot(xsd, w1_ref[...], preferred_element_type=f32) + sh1_ref[...]
    y = _gelu_erf(z)                                        # (M1, 4*D_out) f32

    # Exact zero padding of the GELU'd activation (GELU(shift) != 0 in general): zero the
    # left-pad super-column everywhere and, on the first row tile, the first super-row.
    cs_iota = lax.broadcasted_iota(jnp.int32, (Ws, 1), 0)
    keep = jnp.concatenate([(cs_iota != 0).astype(f32)] * (Th + 1), axis=0)   # (M1, 1)
    row_iota = lax.broadcasted_iota(jnp.int32, (M1, 1), 0)
    is_top = (pl.program_id(1) == 0).astype(f32)
    keep = keep * (1.0 - is_top * (row_iota < Ws).astype(f32))
    y = y * keep

    # ---- stage 2: 3x3 stride-2 conv as 4 batched GEMMs over the flat layout ----
    # One appended zero row lets tap (dh,dw)=(1,1) over-run into a discarded position;
    # the last entry of every Ws-group of acc is an over-compute garbage column.
    yx = jnp.concatenate([y, jnp.zeros((1, 4 * d_out), f32)], axis=0)   # (M1+1, 4*D_out)
    acc = None
    for dh in range(2):
        for dw in range(2):
            s = dh * Ws + dw
            lhs = yx[s:s + TW, :].astype(w2_ref.dtype)
            term = jnp.dot(lhs, w2_ref[2 * dh + dw], preferred_element_type=f32)
            acc = term if acc is None else acc + term
    acc = acc + sh2_ref[...]                                # (Th*Ws, D_out)

    # TODO(synk): for D_out < 128 these per-row stores are masked (sub-lane-width); a
    # lane-dense (Wo*D_out) repack would need an in-kernel minor-dim reshape, skipped
    # for robust lowering (lane-dense already for realistic D_out >= 128).
    for oh in range(Th):
        o_ref[oh] = acc[oh * Ws:oh * Ws + Wo, :].astype(o_ref.dtype)


# ------------------------------ module port -------------------------------

def _pick_row_tile(Ho, B):
    """Largest divisor of Ho (capped at 32) as the output-row tile; if that would leave a
    single grid step in total, split once more so both v7x TensorCores get work.
    TODO(synk): a cdiv grid + masked tail for non-dividing Ho is not implemented."""
    divisors = [d for d in range(1, Ho + 1) if Ho % d == 0]
    th = max(d for d in divisors if d <= 32)
    if B * (Ho // th) < 2:
        smaller = [d for d in divisors if d < th]
        if smaller:
            th = max(smaller)
    return th


def downsample_forward(x, params, input_resolution):
    """Port of Downsample.forward.

    x: (B, H*W, D_in) tokens or (B, D_in, H, W) NCHW.
    returns: (B, Ho*Wo, D_out) with Ho = H//2, Wo = W//2.
    """
    H, W = input_resolution
    assert H % 2 == 0 and W % 2 == 0, "TODO(synk): odd input resolutions not supported"

    if x.ndim == 3:
        B, d_in = x.shape[0], x.shape[-1]
        # FREE row-major view: natural column pairs packed into lanes, no HBM copy.
        xv = x.reshape(B, H, W // 2, 2 * d_in)
    else:                                                   # NCHW -> NHWC (one transpose)
        B, d_in = x.shape[0], x.shape[1]
        xv = jnp.transpose(x, (0, 2, 3, 1)).reshape(B, H, W // 2, 2 * d_in)

    dt = xv.dtype
    f32 = jnp.float32
    w1 = params["w1"]                                       # (D_out, D_in, 1, 1)
    w2 = params["w2"]                                       # (D_out, D_out, 3, 3)
    d_out = w1.shape[0]
    Ho, Wo = H // 2, W // 2

    # Fold BN scales into the conv weights (folding in f32, cast to the compute dtype last).
    w1_mat = jnp.transpose(w1[:, :, 0, 0].astype(f32), (1, 0)) * params["bn1_scale"].astype(f32)
    w1_sd = jnp.kron(jnp.eye(4, dtype=f32), w1_mat).astype(dt)         # (4*D_in, 4*D_out)
    sh1_sd = jnp.tile(params["bn1_shift"].astype(f32), (1, 4))         # (1, 4*D_out) f32

    # 3x3 weight packed per (dh, dw) super-pixel tap: lane block q = (rp, cp) holds
    # w2[2*dh+rp-1, 2*dw+cp-1] (zero where the tap falls outside the 3x3 window).
    w2_hwio = jnp.transpose(w2.astype(f32), (2, 3, 1, 0)) * params["bn2_scale"].astype(f32)[0]
    w2_sd = jnp.zeros((2, 2, 4 * d_out, d_out), f32)
    for dh in range(2):
        for dw in range(2):
            for rp in range(2):
                for cp in range(2):
                    kh, kw = 2 * dh + rp - 1, 2 * dw + cp - 1
                    if 0 <= kh < 3 and 0 <= kw < 3:
                        q = 2 * rp + cp
                        w2_sd = w2_sd.at[dh, dw, q * d_out:(q + 1) * d_out, :].set(
                            w2_hwio[kh, kw])
    w2_sd = w2_sd.reshape(4, 4 * d_out, d_out).astype(dt)
    sh2 = params["bn2_shift"].astype(f32)                              # (1, D_out) f32

    Th = _pick_row_tile(Ho, B)
    n_tiles = Ho // Th
    assert Th * n_tiles == Ho

    kernel = functools.partial(_downsample_kernel, Th, Wo, d_in, d_out)
    out = pl.pallas_call(
        kernel,
        out_shape=jax.ShapeDtypeStruct((B, Ho, Wo, d_out), dt),
        grid=(B, n_tiles),
        in_specs=[
            # main input rows of this tile (column pairs already lane-packed by the view)
            pl.BlockSpec((None, 2 * Th, Wo, 2 * d_in), lambda b, t: (b, t, 0, 0)),
            # one halo row above (row 2*i0-1; clamped to 0 and masked on the first tile)
            pl.BlockSpec((None, None, Wo, 2 * d_in),
                         lambda b, t: (b, jnp.maximum(2 * Th * t - 1, 0), 0, 0)),
            pl.BlockSpec((4 * d_in, 4 * d_out), lambda b, t: (0, 0)),
            pl.BlockSpec((1, 4 * d_out), lambda b, t: (0, 0)),
            pl.BlockSpec((4, 4 * d_out, d_out), lambda b, t: (0, 0, 0)),
            pl.BlockSpec((1, d_out), lambda b, t: (0, 0)),
        ],
        out_specs=pl.BlockSpec((None, Th, Wo, d_out), lambda b, t: (b, t, 0, 0)),
        compiler_params=pltpu.CompilerParams(
            dimension_semantics=("parallel", "parallel"),
            vmem_limit_bytes=32 * 1024 * 1024),
    )(xv, xv, w1_sd, sh1_sd, w2_sd, sh2)

    # flatten(2).transpose(1, 2) in NCHW == row-major reshape in NHWC (free).
    return out.reshape(B, Ho * Wo, d_out)


# ------------------------------ parameters ---------------------------------

def make_downsample_params(key, d_in, d_out, dtype=jnp.float32):
    """Synthetic parameters matching the module's shapes.  BatchNorm uses generic
    (nonzero) running stats so the folded shift is nonzero and the kernel's exact
    zero-padding mask is exercised."""
    ks = jax.random.split(key, 10)
    eps = 1e-5
    w1 = jax.random.normal(ks[0], (d_out, d_in, 1, 1), dtype) * 0.1
    w2 = jax.random.normal(ks[1], (d_out, d_out, 3, 3), dtype) * 0.05

    def bn(kg, kb, km, kv):
        gamma = 1.0 + 0.1 * jax.random.normal(kg, (d_out,), dtype)
        beta = 0.1 * jax.random.normal(kb, (d_out,), dtype)
        mean = 0.1 * jax.random.normal(km, (d_out,), dtype)
        var = jax.random.uniform(kv, (d_out,), dtype, 0.5, 1.5)
        scale = gamma / jnp.sqrt(var + eps)
        shift = beta - mean * scale
        return scale.reshape(1, d_out), shift.reshape(1, d_out)

    s1, b1 = bn(*ks[2:6])
    s2, b2 = bn(*ks[6:10])
    return dict(w1=w1, w2=w2, bn1_scale=s1, bn1_shift=b1, bn2_scale=s2, bn2_shift=b2)


# ------------------------------ reference ----------------------------------

def _reference(x, params, input_resolution):
    H, W = input_resolution
    B, _, d_in = x.shape
    d_out = params["w1"].shape[0]
    xh = x.reshape(B, H, W, d_in)
    w1_mat = jnp.transpose(params["w1"][:, :, 0, 0], (1, 0))
    y1 = xh @ w1_mat
    y1 = y1 * params["bn1_scale"][0] + params["bn1_shift"][0]
    y1 = jax.nn.gelu(y1, approximate=False)
    w2_hwio = jnp.transpose(params["w2"], (2, 3, 1, 0))
    y2 = lax.conv_general_dilated(
        y1, w2_hwio, window_strides=(2, 2), padding=((1, 1), (1, 1)),
        dimension_numbers=("NHWC", "HWIO", "NHWC"))
    y2 = y2 * params["bn2_scale"][0] + params["bn2_shift"][0]
    Ho, Wo = y2.shape[1], y2.shape[2]
    return y2.reshape(B, Ho * Wo, d_out)


# --------------------------------- main -------------------------------------

if __name__ == "__main__":
    B, H, W = 2, 16, 16
    D_in, D_out = 4, 32
    input_resolution = (H, W)

    key = jax.random.PRNGKey(0)
    kx, kp = jax.random.split(key)
    x = jax.random.normal(kx, (B, H * W, D_in), jnp.float32)   # token input (B, H*W, D_in)
    params = make_downsample_params(kp, D_in, D_out)

    fwd = jax.jit(functools.partial(downsample_forward, input_resolution=input_resolution))
    out = jax.block_until_ready(fwd(x, params))

    ref = jax.block_until_ready(_reference(x, params, input_resolution))
    assert out.shape == (B, (H // 2) * (W // 2), D_out), out.shape
    max_err = float(jnp.max(jnp.abs(out - ref)))
    assert jnp.allclose(out, ref, atol=2e-3, rtol=2e-3), max_err

    print("KERNEL_OK")
</pallas_src>

<mosaic_0001>
module attributes {stable_mosaic.version = 11 : i64} {
  func.func @_downsample_kernel(%arg0: i32, %arg1: i32, %arg2: memref<1x16x8x8xf32, #tpu.memory_space<vmem>>, %arg3: memref<1x1x8x8xf32, #tpu.memory_space<vmem>>, %arg4: memref<16x128xf32, #tpu.memory_space<vmem>>, %arg5: memref<1x128xf32, #tpu.memory_space<vmem>>, %arg6: memref<4x128x32xf32, #tpu.memory_space<vmem>>, %arg7: memref<1x32xf32, #tpu.memory_space<vmem>>, %arg8: memref<1x8x8x32xf32, #tpu.memory_space<vmem>>) attributes {dimension_semantics = [#tpu.dimension_semantics<parallel>, #tpu.dimension_semantics<parallel>], iteration_bounds = array<i64: 2, 1>, scalar_prefetch = 0 : i64, scratch_operands = 0 : i64, tpu.core_type = #tpu.core_type<tc>, window_params = [{transform_indices = @transform_0, window_bounds = array<i64: 1, 16, 8, 8>}, {transform_indices = @transform_1, window_bounds = array<i64: 1, 1, 8, 8>}, {pipeline_mode = #tpu.pipeline_mode<synchronous>, transform_indices = @transform_2, window_bounds = array<i64: 16, 128>}, {pipeline_mode = #tpu.pipeline_mode<synchronous>, transform_indices = @transform_3, window_bounds = array<i64: 1, 128>}, {pipeline_mode = #tpu.pipeline_mode<synchronous>, transform_indices = @transform_4, window_bounds = array<i64: 4, 128, 32>}, {pipeline_mode = #tpu.pipeline_mode<synchronous>, transform_indices = @transform_5, window_bounds = array<i64: 1, 32>}, {transform_indices = @transform_6, window_bounds = array<i64: 1, 8, 8, 32>}]} {
    %cst = arith.constant 0.000000e+00 : f32
    %0 = vector.broadcast %cst : f32 to vector<1x16xf32>
    %cst_0 = arith.constant 0.000000e+00 : f32
    %1 = vector.broadcast %cst_0 : f32 to vector<8x8xf32>
    %c0 = arith.constant 0 : index
    %c0_1 = arith.constant 0 : index
    %c0_2 = arith.constant 0 : index
    %c0_3 = arith.constant 0 : index
    %2 = vector.load %arg3[%c0, %c0_1, %c0_2, %c0_3] : memref<1x1x8x8xf32, #tpu.memory_space<vmem>>, vector<1x1x8x8xf32>
    %3 = vector.shape_cast %2 : vector<1x1x8x8xf32> to vector<8x8xf32>
    %4 = tpu.concatenate %1, %3 in 1 : vector<8x8xf32>, vector<8x8xf32> -> vector<8x16xf32>
    %c0_4 = arith.constant 0 : index
    %c0_5 = arith.constant 0 : index
    %c0_6 = arith.constant 0 : index
    %c0_7 = arith.constant 0 : index
    %5 = vector.load %arg2[%c0_4, %c0_5, %c0_6, %c0_7] : memref<1x16x8x8xf32, #tpu.memory_space<vmem>>, vector<1x1x8x8xf32>
    %6 = vector.shape_cast %5 : vector<1x1x8x8xf32> to vector<8x8xf32>
    %c0_8 = arith.constant 0 : index
    %c1 = arith.constant 1 : index
    %c0_9 = arith.constant 0 : index
    %c0_10 = arith.constant 0 : index
    %7 = vector.load %arg2[%c0_8, %c1, %c0_9, %c0_10] : memref<1x16x8x8xf32, #tpu.memory_space<vmem>>, vector<1x1x8x8xf32>
    %8 = vector.shape_cast %7 : vector<1x1x8x8xf32> to vector<8x8xf32>
    %9 = tpu.concatenate %6, %8 in 1 : vector<8x8xf32>, vector<8x8xf32> -> vector<8x16xf32>
    %c0_11 = arith.constant 0 : index
    %c2 = arith.constant 2 : index
    %c0_12 = arith.constant 0 : index
    %c0_13 = arith.constant 0 : index
    %10 = vector.load %arg2[%c0_11, %c2, %c0_12, %c0_13] : memref<1x16x8x8xf32, #tpu.memory_space<vmem>>, vector<1x1x8x8xf32>
    %11 = vector.shape_cast %10 : vector<1x1x8x8xf32> to vector<8x8xf32>
    %c0_14 = arith.constant 0 : index
    %c3 = arith.constant 3 : index
    %c0_15 = arith.constant 0 : index
    %c0_16 = arith.constant 0 : index
    %12 = vector.load %arg2[%c0_14, %c3, %c0_15, %c0_16] : memref<1x16x8x8xf32, #tpu.memory_space<vmem>>, vector<1x1x8x8xf32>
    %13 = vector.shape_cast %12 : vector<1x1x8x8xf32> to vector<8x8xf32>
    %14 = tpu.concatenate %11, %13 in 1 : vector<8x8xf32>, vector<8x8xf32> -> vector<8x16xf32>
    %c0_17 = arith.constant 0 : index
    %c4 = arith.constant 4 : index
    %c0_18 = arith.constant 0 : index
    %c0_19 = arith.constant 0 : index
    %15 = vector.load %arg2[%c0_17, %c4, %c0_18, %c0_19] : memref<1x16x8x8xf32, #tpu.memory_space<vmem>>, vector<1x1x8x8xf32>
    %16 = vector.shape_cast %15 : vector<1x1x8x8xf32> to vector<8x8xf32>
    %c0_20 = arith.constant 0 : index
    %c5 = arith.constant 5 : index
    %c0_21 = arith.constant 0 : index
    %c0_22 = arith.constant 0 : index
    %17 = vector.load %arg2[%c0_20, %c5, %c0_21, %c0_22] : memref<1x16x8x8xf32, #tpu.memory_space<vmem>>, vector<1x1x8x8xf32>
    %18 = vector.shape_cast %17 : vector<1x1x8x8xf32> to vector<8x8xf32>
    %19 = tpu.concatenate %16, %18 in 1 : vector<8x8xf32>, vector<8x8xf32> -> vector<8x16xf32>
    %c0_23 = arith.constant 0 : index
    %c6 = arith.constant 6 : index
    %c0_24 = arith.constant 0 : index
    %c0_25 = arith.constant 0 : index
    %20 = vector.load %arg2[%c0_23, %c6, %c0_24, %c0_25] : memref<1x16x8x8xf32, #tpu.memory_space<vmem>>, vector<1x1x8x8xf32>
    %21 = vector.shape_cast %20 : vector<1x1x8x8xf32> to vector<8x8xf32>
    %c0_26 = arith.constant 0 : index
    %c7 = arith.constant 7 : index
    %c0_27 = arith.constant 0 : index
    %c0_28 = arith.constant 0 : index
    %22 = vector.load %arg2[%c0_26, %c7, %c0_27, %c0_28] : memref<1x16x8x8xf32, #tpu.memory_space<vmem>>, vector<1x1x8x8xf32>
    %23 = vector.shape_cast %22 : vector<1x1x8x8xf32> to vector<8x8xf32>
    %24 = tpu.concatenate %21, %23 in 1 : vector<8x8xf32>, vector<8x8xf32> -> vector<8x16xf32>
    %c0_29 = arith.constant 0 : index
    %c8 = arith.constant 8 : index
    %c0_30 = arith.constant 0 : index
    %c0_31 = arith.constant 0 : index
    %25 = vector.load %arg2[%c0_29, %c8, %c0_30, %c0_31] : memref<1x16x8x8xf32, #tpu.memory_space<vmem>>, vector<1x1x8x8xf32>
    %26 = vector.shape_cast %25 : vector<1x1x8x8xf32> to vector<8x8xf32>
    %c0_32 = arith.constant 0 : index
    %c9 = arith.constant 9 : index
    %c0_33 = arith.constant 0 : index
    %c0_34 = arith.constant 0 : index
    %27 = vector.load %arg2[%c0_32, %c9, %c0_33, %c0_34] : memref<1x16x8x8xf32, #tpu.memory_space<vmem>>, vector<1x1x8x8xf32>
    %28 = vector.shape_cast %27 : vector<1x1x8x8xf32> to vector<8x8xf32>
    %29 = tpu.concatenate %26, %28 in 1 : vector<8x8xf32>, vector<8x8xf32> -> vector<8x16xf32>
    %c0_35 = arith.constant 0 : index
    %c10 = arith.constant 10 : index
    %c0_36 = arith.constant 0 : index
    %c0_37 = arith.constant 0 : index
    %30 = vector.load %arg2[%c0_35, %c10, %c0_36, %c0_37] : memref<1x16x8x8xf32, #tpu.memory_space<vmem>>, vector<1x1x8x8xf32>
    %31 = vector.shape_cast %30 : vector<1x1x8x8xf32> to vector<8x8xf32>
    %c0_38 = arith.constant 0 : index
    %c11 = arith.constant 11 : index
    %c0_39 = arith.constant 0 : index
    %c0_40 = arith.constant 0 : index
    %32 = vector.load %arg2[%c0_38, %c11, %c0_39, %c0_40] : memref<1x16x8x8xf32, #tpu.memory_space<vmem>>, vector<1x1x8x8xf32>
    %33 = vector.shape_cast %32 : vector<1x1x8x8xf32> to vector<8x8xf32>
    %34 = tpu.concatenate %31, %33 in 1 : vector<8x8xf32>, vector<8x8xf32> -> vector<8x16xf32>
    %c0_41 = arith.constant 0 : index
    %c12 = arith.constant 12 : index
    %c0_42 = arith.constant 0 : index
    %c0_43 = arith.constant 0 : index
    %35 = vector.load %arg2[%c0_41, %c12, %c0_42, %c0_43] : memref<1x16x8x8xf32, #tpu.memory_space<vmem>>, vector<1x1x8x8xf32>
    %36 = vector.shape_cast %35 : vector<1x1x8x8xf32> to vector<8x8xf32>
    %c0_44 = arith.constant 0 : index
    %c13 = arith.constant 13 : index
    %c0_45 = arith.constant 0 : index
    %c0_46 = arith.constant 0 : index
    %37 = vector.load %arg2[%c0_44, %c13, %c0_45, %c0_46] : memref<1x16x8x8xf32, #tpu.memory_space<vmem>>, vector<1x1x8x8xf32>
    %38 = vector.shape_cast %37 : vector<1x1x8x8xf32> to vector<8x8xf32>
    %39 = tpu.concatenate %36, %38 in 1 : vector<8x8xf32>, vector<8x8xf32> -> vector<8x16xf32>
    %c0_47 = arith.constant 0 : index
    %c14 = arith.constant 14 : index
    %c0_48 = arith.constant 0 : index
    %c0_49 = arith.constant 0 : index
    %40 = vector.load %arg2[%c0_47, %c14, %c0_48, %c0_49] : memref<1x16x8x8xf32, #tpu.memory_space<vmem>>, vector<1x1x8x8xf32>
    %41 = vector.shape_cast %40 : vector<1x1x8x8xf32> to vector<8x8xf32>
    %c0_50 = arith.constant 0 : index
    %c15 = arith.constant 15 : index
    %c0_51 = arith.constant 0 : index
    %c0_52 = arith.constant 0 : index
    %42 = vector.load %arg2[%c0_50, %c15, %c0_51, %c0_52] : memref<1x16x8x8xf32, #tpu.memory_space<vmem>>, vector<1x1x8x8xf32>
    %43 = vector.shape_cast %42 : vector<1x1x8x8xf32> to vector<8x8xf32>
    %44 = tpu.concatenate %41, %43 in 1 : vector<8x8xf32>, vector<8x8xf32> -> vector<8x16xf32>
    %45 = tpu.concatenate %0, %4, %0, %9, %0, %14, %0, %19, %0, %24, %0, %29, %0, %34, %0, %39 in 0 : vector<1x16xf32>, vector<8x16xf32>, vector<1x16xf32>, vector<8x16xf32>, vector<1x16xf32>, vector<8x16xf32>, vector<1x16xf32>, vector<8x16xf32>, vector<1x16xf32>, vector<8x16xf32>, vector<1x16xf32>, vector<8x16xf32>, vector<1x16xf32>, vector<8x16xf32>, vector<1x16xf32>, vector<8x16xf32> -> vector<72x16xf32>
    %46 = tpu.concatenate %0, %44 in 0 : vector<1x16xf32>, vector<8x16xf32> -> vector<9x16xf32>
    %47 = tpu.concatenate %45, %46 in 0 : vector<72x16xf32>, vector<9x16xf32> -> vector<81x16xf32>
    %c0_53 = arith.constant 0 : index
    %c0_54 = arith.constant 0 : index
    %48 = vector.load %arg4[%c0_53, %c0_54] : memref<16x128xf32, #tpu.memory_space<vmem>>, vector<16x128xf32>
    %cst_55 = arith.constant dense<0.000000e+00> : vector<81x128xf32>
    %49 = tpu.matmul %47, %48, %cst_55 {dimension_numbers = #tpu.dot_dimension_numbers<[1], [0], [0], [1], [0, 0, 1, 1], [], []>} : vector<81x16xf32>, vector<16x128xf32>, vector<81x128xf32> -> vector<81x128xf32>
    %c0_56 = arith.constant 0 : index
    %c0_57 = arith.constant 0 : index
    %50 = vector.load %arg5[%c0_56, %c0_57] : memref<1x128xf32, #tpu.memory_space<vmem>>, vector<1x128xf32>
    %51 = vector.broadcast %50 : vector<1x128xf32> to vector<81x128xf32>
    %52 = arith.addf %49, %51 : vector<81x128xf32>
    %cst_58 = arith.constant 0.707106769 : f32
    %53 = vector.broadcast %cst_58 : f32 to vector<81x128xf32>
    %54 = arith.mulf %52, %53 : vector<81x128xf32>
    %55 = math.absf %54 : vector<81x128xf32>
    %cst_59 = arith.constant 0.000000e+00 : f32
    %56 = vector.broadcast %cst_59 : f32 to vector<81x128xf32>
    %57 = arith.cmpf oge, %54, %56 : vector<81x128xf32>
    %cst_60 = arith.constant 1.000000e+00 : f32
    %cst_61 = arith.constant -1.000000e+00 : f32
    %58 = vector.broadcast %cst_60 : f32 to vector<81x128xf32>
    %59 = vector.broadcast %cst_61 : f32 to vector<81x128xf32>
    %60 = arith.select %57, %58, %59 : vector<81x128xi1>, vector<81x128xf32>
    %cst_62 = arith.constant 0.327591091 : f32
    %61 = vector.broadcast %cst_62 : f32 to vector<81x128xf32>
    %62 = arith.mulf %61, %55 : vector<81x128xf32>
    %cst_63 = arith.constant 1.000000e+00 : f32
    %63 = vector.broadcast %cst_63 : f32 to vector<81x128xf32>
    %64 = arith.addf %63, %62 : vector<81x128xf32>
    %65 = tpu.reciprocal %64 {approx = true} : vector<81x128xf32> -> vector<81x128xf32>
    %cst_64 = arith.constant 1.06140542 : f32
    %66 = vector.broadcast %cst_64 : f32 to vector<81x128xf32>
    %67 = arith.mulf %66, %65 : vector<81x128xf32>
    %cst_65 = arith.constant -1.45315206 : f32
    %68 = vector.broadcast %cst_65 : f32 to vector<81x128xf32>
    %69 = arith.addf %67, %68 : vector<81x128xf32>
    %70 = arith.mulf %69, %65 : vector<81x128xf32>
    %cst_66 = arith.constant 1.42141378 : f32
    %71 = vector.broadcast %cst_66 : f32 to vector<81x128xf32>
    %72 = arith.addf %70, %71 : vector<81x128xf32>
    %73 = arith.mulf %72, %65 : vector<81x128xf32>
    %cst_67 = arith.constant -0.284496725 : f32
    %74 = vector.broadcast %cst_67 : f32 to vector<81x128xf32>
    %75 = arith.addf %73, %74 : vector<81x128xf32>
    %76 = arith.mulf %75, %65 : vector<81x128xf32>
    %cst_68 = arith.constant 0.254829586 : f32
    %77 = vector.broadcast %cst_68 : f32 to vector<81x128xf32>
    %78 = arith.addf %76, %77 : vector<81x128xf32>
    %79 = arith.mulf %78, %65 : vector<81x128xf32>
    %cst_69 = arith.constant 0.000000e+00 : f32
    %80 = vector.broadcast %cst_69 : f32 to vector<81x128xf32>
    %81 = arith.subf %80, %55 : vector<81x128xf32>
    %82 = arith.mulf %81, %55 : vector<81x128xf32>
    %83 = math.exp %82 : vector<81x128xf32>
    %84 = arith.mulf %79, %83 : vector<81x128xf32>
    %cst_70 = arith.constant 1.000000e+00 : f32
    %85 = vector.broadcast %cst_70 : f32 to vector<81x128xf32>
    %86 = arith.subf %85, %84 : vector<81x128xf32>
    %87 = arith.mulf %60, %86 : vector<81x128xf32>
    %cst_71 = arith.constant 5.000000e-01 : f32
    %88 = vector.broadcast %cst_71 : f32 to vector<81x128xf32>
    %89 = arith.mulf %88, %52 : vector<81x128xf32>
    %cst_72 = arith.constant 1.000000e+00 : f32
    %90 = vector.broadcast %cst_72 : f32 to vector<81x128xf32>
    %91 = arith.addf %90, %87 : vector<81x128xf32>
    %92 = arith.mulf %89, %91 : vector<81x128xf32>
    %93 = tpu.iota {dimensions = array<i32: 0>} : vector<9x1xi32>
    %c0_i32 = arith.constant 0 : i32
    %94 = vector.broadcast %c0_i32 : i32 to vector<9x1xi32>
    %95 = arith.cmpi ne, %93, %94 : vector<9x1xi32>
    %96 = arith.extui %95 : vector<9x1xi1> to vector<9x1xi32>
    %97 = arith.sitofp %96 : vector<9x1xi32> to vector<9x1xf32>
    %98 = tpu.concatenate %97, %97, %97, %97, %97, %97, %97, %97, %97 in 0 : vector<9x1xf32>, vector<9x1xf32>, vector<9x1xf32>, vector<9x1xf32>, vector<9x1xf32>, vector<9x1xf32>, vector<9x1xf32>, vector<9x1xf32>, vector<9x1xf32> -> vector<81x1xf32>
    %99 = tpu.iota {dimensions = array<i32: 0>} : vector<81x1xi32>
    %c0_i32_73 = arith.constant 0 : i32
    %100 = arith.cmpi eq, %arg1, %c0_i32_73 : i32
    %101 = arith.extui %100 : i1 to i32
    %102 = arith.sitofp %101 : i32 to f32
    %c9_i32 = arith.constant 9 : i32
    %103 = vector.broadcast %c9_i32 : i32 to vector<81x1xi32>
    %104 = arith.cmpi slt, %99, %103 : vector<81x1xi32>
    %105 = arith.extui %104 : vector<81x1xi1> to vector<81x1xi32>
    %106 = arith.sitofp %105 : vector<81x1xi32> to vector<81x1xf32>
    %107 = vector.broadcast %102 : f32 to vector<81x1xf32>
    %108 = arith.mulf %107, %106 : vector<81x1xf32>
    %cst_74 = arith.constant 1.000000e+00 : f32
    %109 = vector.broadcast %cst_74 : f32 to vector<81x1xf32>
    %110 = arith.subf %109, %108 : vector<81x1xf32>
    %111 = arith.mulf %98, %110 : vector<81x1xf32>
    %112 = vector.broadcast %111 : vector<81x1xf32> to vector<81x128xf32>
    %113 = arith.mulf %92, %112 : vector<81x128xf32>
    %cst_75 = arith.constant 0.000000e+00 : f32
    %114 = vector.broadcast %cst_75 : f32 to vector<1x128xf32>
    %115 = tpu.concatenate %113, %114 in 0 : vector<81x128xf32>, vector<1x128xf32> -> vector<82x128xf32>
    %116 = vector.extract_strided_slice %115 {offsets = [0, 0], sizes = [72, 128], strides = [1, 1]} : vector<82x128xf32> to vector<72x128xf32>
    %c0_76 = arith.constant 0 : index
    %c0_77 = arith.constant 0 : index
    %c0_78 = arith.constant 0 : index
    %117 = vector.load %arg6[%c0_76, %c0_77, %c0_78] : memref<4x128x32xf32, #tpu.memory_space<vmem>>, vector<1x128x32xf32>
    %118 = vector.shape_cast %117 : vector<1x128x32xf32> to vector<128x32xf32>
    %cst_79 = arith.constant dense<0.000000e+00> : vector<72x32xf32>
    %119 = tpu.matmul %116, %118, %cst_79 {dimension_numbers = #tpu.dot_dimension_numbers<[1], [0], [0], [1], [0, 0, 1, 1], [], []>} : vector<72x128xf32>, vector<128x32xf32>, vector<72x32xf32> -> vector<72x32xf32>
    %120 = vector.extract_strided_slice %115 {offsets = [1, 0], sizes = [72, 128], strides = [1, 1]} : vector<82x128xf32> to vector<72x128xf32>
    %c1_80 = arith.constant 1 : index
    %c0_81 = arith.constant 0 : index
    %c0_82 = arith.constant 0 : index
    %121 = vector.load %arg6[%c1_80, %c0_81, %c0_82] : memref<4x128x32xf32, #tpu.memory_space<vmem>>, vector<1x128x32xf32>
    %122 = vector.shape_cast %121 : vector<1x128x32xf32> to vector<128x32xf32>
    %cst_83 = arith.constant dense<0.000000e+00> : vector<72x32xf32>
    %123 = tpu.matmul %120, %122, %cst_83 {dimension_numbers = #tpu.dot_dimension_numbers<[1], [0], [0], [1], [0, 0, 1, 1], [], []>} : vector<72x128xf32>, vector<128x32xf32>, vector<72x32xf32> -> vector<72x32xf32>
    %124 = arith.addf %119, %123 : vector<72x32xf32>
    %125 = vector.extract_strided_slice %115 {offsets = [9, 0], sizes = [72, 128], strides = [1, 1]} : vector<82x128xf32> to vector<72x128xf32>
    %c2_84 = arith.constant 2 : index
    %c0_85 = arith.constant 0 : index
    %c0_86 = arith.constant 0 : index
    %126 = vector.load %arg6[%c2_84, %c0_85, %c0_86] : memref<4x128x32xf32, #tpu.memory_space<vmem>>, vector<1x128x32xf32>
    %127 = vector.shape_cast %126 : vector<1x128x32xf32> to vector<128x32xf32>
    %cst_87 = arith.constant dense<0.000000e+00> : vector<72x32xf32>
    %128 = tpu.matmul %125, %127, %cst_87 {dimension_numbers = #tpu.dot_dimension_numbers<[1], [0], [0], [1], [0, 0, 1, 1], [], []>} : vector<72x128xf32>, vector<128x32xf32>, vector<72x32xf32> -> vector<72x32xf32>
    %129 = arith.addf %124, %128 : vector<72x32xf32>
    %130 = vector.extract_strided_slice %115 {offsets = [10, 0], sizes = [72, 128], strides = [1, 1]} : vector<82x128xf32> to vector<72x128xf32>
    %c3_88 = arith.constant 3 : index
    %c0_89 = arith.constant 0 : index
    %c0_90 = arith.constant 0 : index
    %131 = vector.load %arg6[%c3_88, %c0_89, %c0_90] : memref<4x128x32xf32, #tpu.memory_space<vmem>>, vector<1x128x32xf32>
    %132 = vector.shape_cast %131 : vector<1x128x32xf32> to vector<128x32xf32>
    %cst_91 = arith.constant dense<0.000000e+00> : vector<72x32xf32>
    %133 = tpu.matmul %130, %132, %cst_91 {dimension_numbers = #tpu.dot_dimension_numbers<[1], [0], [0], [1], [0, 0, 1, 1], [], []>} : vector<72x128xf32>, vector<128x32xf32>, vector<72x32xf32> -> vector<72x32xf32>
    %134 = arith.addf %129, %133 : vector<72x32xf32>
    %c0_92 = arith.constant 0 : index
    %c0_93 = arith.constant 0 : index
    %135 = vector.load %arg7[%c0_92, %c0_93] : memref<1x32xf32, #tpu.memory_space<vmem>>, vector<1x32xf32>
    %136 = vector.broadcast %135 : vector<1x32xf32> to vector<72x32xf32>
    %137 = arith.addf %134, %136 : vector<72x32xf32>
    %138 = vector.extract_strided_slice %137 {offsets = [0, 0], sizes = [8, 32], strides = [1, 1]} : vector<72x32xf32> to vector<8x32xf32>
    %c0_94 = arith.constant 0 : index
    %c0_95 = arith.constant 0 : index
    %c0_96 = arith.constant 0 : index
    %c0_97 = arith.constant 0 : index
    %139 = vector.load %arg8[%c0_94, %c0_95, %c0_96, %c0_97] : memref<1x8x8x32xf32, #tpu.memory_space<vmem>>, vector<1x1x8x32xf32>
    %140 = vector.shape_cast %139 : vector<1x1x8x32xf32> to vector<8x32xf32>
    %141 = vector.shape_cast %138 : vector<8x32xf32> to vector<1x1x8x32xf32>
    tpu.vector_store %arg8[%c0_94, %c0_95, %c0_96, %c0_97], %141 {strides = array<i32>} : memref<1x8x8x32xf32, #tpu.memory_space<vmem>>, vector<1x1x8x32xf32>,
    %142 = vector.extract_strided_slice %137 {offsets = [9, 0], sizes = [8, 32], strides = [1, 1]} : vector<72x32xf32> to vector<8x32xf32>
    %c0_98 = arith.constant 0 : index
    %c1_99 = arith.constant 1 : index
    %c0_100 = arith.constant 0 : index
    %c0_101 = arith.constant 0 : index
    %143 = vector.load %arg8[%c0_98, %c1_99, %c0_100, %c0_101] : memref<1x8x8x32xf32, #tpu.memory_space<vmem>>, vector<1x1x8x32xf32>
    %144 = vector.shape_cast %143 : vector<1x1x8x32xf32> to vector<8x32xf32>
    %145 = vector.shape_cast %142 : vector<8x32xf32> to vector<1x1x8x32xf32>
    tpu.vector_store %arg8[%c0_98, %c1_99, %c0_100, %c0_101], %145 {strides = array<i32>} : memref<1x8x8x32xf32, #tpu.memory_space<vmem>>, vector<1x1x8x32xf32>,
    %146 = vector.extract_strided_slice %137 {offsets = [18, 0], sizes = [8, 32], strides = [1, 1]} : vector<72x32xf32> to vector<8x32xf32>
    %c0_102 = arith.constant 0 : index
    %c2_103 = arith.constant 2 : index
    %c0_104 = arith.constant 0 : index
    %c0_105 = arith.constant 0 : index
    %147 = vector.load %arg8[%c0_102, %c2_103, %c0_104, %c0_105] : memref<1x8x8x32xf32, #tpu.memory_space<vmem>>, vector<1x1x8x32xf32>
    %148 = vector.shape_cast %147 : vector<1x1x8x32xf32> to vector<8x32xf32>
    %149 = vector.shape_cast %146 : vector<8x32xf32> to vector<1x1x8x32xf32>
    tpu.vector_store %arg8[%c0_102, %c2_103, %c0_104, %c0_105], %149 {strides = array<i32>} : memref<1x8x8x32xf32, #tpu.memory_space<vmem>>, vector<1x1x8x32xf32>,
    %150 = vector.extract_strided_slice %137 {offsets = [27, 0], sizes = [8, 32], strides = [1, 1]} : vector<72x32xf32> to vector<8x32xf32>
    %c0_106 = arith.constant 0 : index
    %c3_107 = arith.constant 3 : index
    %c0_108 = arith.constant 0 : index
    %c0_109 = arith.constant 0 : index
    %151 = vector.load %arg8[%c0_106, %c3_107, %c0_108, %c0_109] : memref<1x8x8x32xf32, #tpu.memory_space<vmem>>, vector<1x1x8x32xf32>
    %152 = vector.shape_cast %151 : vector<1x1x8x32xf32> to vector<8x32xf32>
    %153 = vector.shape_cast %150 : vector<8x32xf32> to vector<1x1x8x32xf32>
    tpu.vector_store %arg8[%c0_106, %c3_107, %c0_108, %c0_109], %153 {strides = array<i32>} : memref<1x8x8x32xf32, #tpu.memory_space<vmem>>, vector<1x1x8x32xf32>,
    %154 = vector.extract_strided_slice %137 {offsets = [36, 0], sizes = [8, 32], strides = [1, 1]} : vector<72x32xf32> to vector<8x32xf32>
    %c0_110 = arith.constant 0 : index
    %c4_111 = arith.constant 4 : index
    %c0_112 = arith.constant 0 : index
    %c0_113 = arith.constant 0 : index
    %155 = vector.load %arg8[%c0_110, %c4_111, %c0_112, %c0_113] : memref<1x8x8x32xf32, #tpu.memory_space<vmem>>, vector<1x1x8x32xf32>
    %156 = vector.shape_cast %155 : vector<1x1x8x32xf32> to vector<8x32xf32>
    %157 = vector.shape_cast %154 : vector<8x32xf32> to vector<1x1x8x32xf32>
    tpu.vector_store %arg8[%c0_110, %c4_111, %c0_112, %c0_113], %157 {strides = array<i32>} : memref<1x8x8x32xf32, #tpu.memory_space<vmem>>, vector<1x1x8x32xf32>,
    %158 = vector.extract_strided_slice %137 {offsets = [45, 0], sizes = [8, 32], strides = [1, 1]} : vector<72x32xf32> to vector<8x32xf32>
    %c0_114 = arith.constant 0 : index
    %c5_115 = arith.constant 5 : index
    %c0_116 = arith.constant 0 : index
    %c0_117 = arith.constant 0 : index
    %159 = vector.load %arg8[%c0_114, %c5_115, %c0_116, %c0_117] : memref<1x8x8x32xf32, #tpu.memory_space<vmem>>, vector<1x1x8x32xf32>
    %160 = vector.shape_cast %159 : vector<1x1x8x32xf32> to vector<8x32xf32>
    %161 = vector.shape_cast %158 : vector<8x32xf32> to vector<1x1x8x32xf32>
    tpu.vector_store %arg8[%c0_114, %c5_115, %c0_116, %c0_117], %161 {strides = array<i32>} : memref<1x8x8x32xf32, #tpu.memory_space<vmem>>, vector<1x1x8x32xf32>,
    %162 = vector.extract_strided_slice %137 {offsets = [54, 0], sizes = [8, 32], strides = [1, 1]} : vector<72x32xf32> to vector<8x32xf32>
    %c0_118 = arith.constant 0 : index
    %c6_119 = arith.constant 6 : index
    %c0_120 = arith.constant 0 : index
    %c0_121 = arith.constant 0 : index
    %163 = vector.load %arg8[%c0_118, %c6_119, %c0_120, %c0_121] : memref<1x8x8x32xf32, #tpu.memory_space<vmem>>, vector<1x1x8x32xf32>
    %164 = vector.shape_cast %163 : vector<1x1x8x32xf32> to vector<8x32xf32>
    %165 = vector.shape_cast %162 : vector<8x32xf32> to vector<1x1x8x32xf32>
    tpu.vector_store %arg8[%c0_118, %c6_119, %c0_120, %c0_121], %165 {strides = array<i32>} : memref<1x8x8x32xf32, #tpu.memory_space<vmem>>, vector<1x1x8x32xf32>,
    %166 = vector.extract_strided_slice %137 {offsets = [63, 0], sizes = [8, 32], strides = [1, 1]} : vector<72x32xf32> to vector<8x32xf32>
    %c0_122 = arith.constant 0 : index
    %c7_123 = arith.constant 7 : index
    %c0_124 = arith.constant 0 : index
    %c0_125 = arith.constant 0 : index
    %167 = vector.load %arg8[%c0_122, %c7_123, %c0_124, %c0_125] : memref<1x8x8x32xf32, #tpu.memory_space<vmem>>, vector<1x1x8x32xf32>
    %168 = vector.shape_cast %167 : vector<1x1x8x32xf32> to vector<8x32xf32>
    %169 = vector.shape_cast %166 : vector<8x32xf32> to vector<1x1x8x32xf32>
    tpu.vector_store %arg8[%c0_122, %c7_123, %c0_124, %c0_125], %169 {strides = array<i32>} : memref<1x8x8x32xf32, #tpu.memory_space<vmem>>, vector<1x1x8x32xf32>,
    return
  }
  func.func @transform_0(%arg0: i32, %arg1: i32) -> (i32, i32, i32, i32) {
    %c0_i32 = arith.constant 0 : i32
    %c0_i32_0 = arith.constant 0 : i32
    %c0_i32_1 = arith.constant 0 : i32
    return %arg0, %arg1, %c0_i32, %c0_i32_0 : i32, i32, i32, i32
  }
  func.func @transform_1(%arg0: i32, %arg1: i32) -> (i32, i32, i32, i32) {
    %c16_i32 = arith.constant 16 : i32
    %0 = arith.muli %c16_i32, %arg1 : i32
    %c1_i32 = arith.constant 1 : i32
    %1 = arith.subi %0, %c1_i32 : i32
    %c0_i32 = arith.constant 0 : i32
    %2 = arith.maxsi %1, %c0_i32 : i32
    %c0_i32_0 = arith.constant 0 : i32
    %c0_i32_1 = arith.constant 0 : i32
    %c0_i32_2 = arith.constant 0 : i32
    return %arg0, %2, %c0_i32_0, %c0_i32_1 : i32, i32, i32, i32
  }
  func.func @transform_2(%arg0: i32, %arg1: i32) -> (i32, i32) {
    %c0_i32 = arith.constant 0 : i32
    %c0_i32_0 = arith.constant 0 : i32
    %c0_i32_1 = arith.constant 0 : i32
    return %c0_i32, %c0_i32_0 : i32, i32
  }
  func.func @transform_3(%arg0: i32, %arg1: i32) -> (i32, i32) {
    %c0_i32 = arith.constant 0 : i32
    %c0_i32_0 = arith.constant 0 : i32
    %c0_i32_1 = arith.constant 0 : i32
    return %c0_i32, %c0_i32_0 : i32, i32
  }
  func.func @transform_4(%arg0: i32, %arg1: i32) -> (i32, i32, i32) {
    %c0_i32 = arith.constant 0 : i32
    %c0_i32_0 = arith.constant 0 : i32
    %c0_i32_1 = arith.constant 0 : i32
    %c0_i32_2 = arith.constant 0 : i32
    return %c0_i32, %c0_i32_0, %c0_i32_1 : i32, i32, i32
  }
  func.func @transform_5(%arg0: i32, %arg1: i32) -> (i32, i32) {
    %c0_i32 = arith.constant 0 : i32
    %c0_i32_0 = arith.constant 0 : i32
    %c0_i32_1 = arith.constant 0 : i32
    return %c0_i32, %c0_i32_0 : i32, i32
  }
  func.func @transform_6(%arg0: i32, %arg1: i32) -> (i32, i32, i32, i32) {
    %c0_i32 = arith.constant 0 : i32
    %c0_i32_0 = arith.constant 0 : i32
    %c0_i32_1 = arith.constant 0 : i32
    return %arg0, %arg1, %c0_i32, %c0_i32_0 : i32, i32, i32, i32
  }
}

</mosaic_0001>

<llo_original>
// kernel: downsample_forward.1
$region0: #{downsample_forward.1}
  #allocation0 [shape = 'u32[]', space=smem, size = 0x4, offset = 0x4, fixed_abs, tag = 'smem constant byte address 0x4 - core index']
  #allocation1 [shape = 'u32[144,128]{1,0:T(1,128)}', space=vmem, size = 0x12000, scoped, tag = 'internal scratch']
  %s0 = inlined_call_operand.vmem [shape: f32[2,16,8,8], index: 0, kind: input, shape index: {}, may-alias: {0,1}]
  %s1 = inlined_call_operand.vmem [shape: f32[2,16,8,8], index: 1, kind: input, shape index: {}, may-alias: {0,1}]
  %s2 = inlined_call_operand.vmem [shape: f32[16,128], index: 2, kind: input, shape index: {}]
  %s3 = inlined_call_operand.vmem [shape: f32[1,128], index: 3, kind: input, shape index: {}]
  %s4 = inlined_call_operand.vmem [shape: f32[4,128,32], index: 4, kind: input, shape index: {}]
  %s5 = inlined_call_operand.vmem [shape: f32[1,32], index: 5, kind: input, shape index: {}]
  %s6 = inlined_call_operand.vmem [shape: f32[2,8,8,32], index: 6, kind: output, shape index: {}]
  %s7 = sld [smem:[#allocation0]]
  $region57: #{downsample_forward.1} parent=0
    _
  %s9 = ssub.s32 1, %s7
  %s10 = scalar_select 0, %s9, %s7
  loop: start=0, step=1, limit=4
  $region2: #{downsample_forward.1} parent=0 // loop_pre_header
    _
  $region3: #{downsample_forward.1} parent=0 // loop_header
    %s12 = sphi 0, %s16
    %p13 = scmp.ge.s32.totalorder %s12, 4
    %s19 = sphi 0, %s31
    %s20 = sphi 0, %s27
    %s21 = sphi 0, %s19
    %s22 = sphi 0, %s20
    %s23 = sphi 0, %s21
    %s24 = sphi 0, %s22
    %s36 = sphi 0, %s38
    %s39 = sphi 0, %s36
    %s40 = sphi 0, %s39
    %s56 = sphi 0, %s40
    %s72 = sphi 0, %s74
    %s75 = sphi 0, %s72
    %s76 = sphi 0, %s75
    %s92 = sphi 0, %s76
    %s96 = sphi 0, %s96
    %s98 = sphi 0, %s96
    %s99 = sphi 0, %s98
    %s113 = sphi 0, %s99
    %s117 = sphi 0, %s117
    %s119 = sphi 0, %s117
    %s120 = sphi 0, %s119
    %s134 = sphi 0, %s120
    %s138 = sphi 0, %s138
    %s140 = sphi 0, %s138
    %s141 = sphi 0, %s140
    %s155 = sphi 0, %s141
    %s159 = sphi 0, %s159
    %s161 = sphi 0, %s159
    %s162 = sphi 0, %s161
    %s176 = sphi 0, %s162
    %s184 = sphi 0, %s186
    %s187 = sphi 0, %s184
    %s188 = sphi 0, %s187
    %s204 = sphi 0, %s188
  $region4: #{downsample_forward.1} parent=0 // loop_header_branch
    %15 = sbr.rel (%p13) target = $region8
  $region5: #{downsample_forward.1} parent=0 // loop_body
    %s17 = ssub.s32 %s12, 1
    %s18 = ssub.s32 %s12, 2
    %s25 = sadd.s32 1, %s20
    %p26 = scmp.ge.s32.totalorder %s25, 1
    %s27 = scalar_select %p26, 0, %s25
    %s28 = sadd.s32 1, %s19
    %s29 = scalar_select %p26, %s28, %s19
    %p30 = scmp.ge.s32.totalorder %s29, 2
    %s31 = scalar_select %p30, 0, %s29
    %s32 = ssub.s32 %s19, %s31
    %s33 = ssub.s32 %s20, %s27
    %s34 = sor.u32 %s32, %s33
    %p35 = scmp.eq.s32.totalorder %s34, 0
    %s37 = sadd.s32 %s36, 1
    %s38 = scalar_select %p35, %s36, %s37
    %p41 = pneg %p35
    %p42 = scmp.eq.s32.totalorder %s12, 1
    %p43 = por %p41, %p42
    %p44 = scmp.ne.s32.totalorder %s36, %s39
    %p45 = scmp.eq.s32.totalorder %s12, 0
    %p46 = por %p44, %p45
    %p47 = scmp.ne.s32.totalorder %s36, %s39
    %p48 = scmp.eq.s32.totalorder %s17, 1
    %p49 = por %p47, %p48
    %p50 = scmp.ne.s32.totalorder %s39, %s40
    %p51 = scmp.eq.s32.totalorder %s17, 0
    %p52 = por %p50, %p51
    %p53 = scmp.ne.s32.totalorder %s39, %s40
    %p54 = scmp.eq.s32.totalorder %s18, 1
    %p55 = por %p53, %p54
    %p57 = scmp.ne.s32.totalorder %s40, %s56
    %p58 = scmp.eq.s32.totalorder %s18, 0
    %p59 = por %p57, %p58
    %s60 = smul.u32 %s20, 16
    %s61 = ssub.s32 %s60, 1
    %p62 = scmp.gt.s32.totalorder %s61, 0
    %s63 = scalar_select %p62, %s61, 0
    %s64 = smul.u32 %s27, 16
    %s65 = ssub.s32 %s64, 1
    %p66 = scmp.gt.s32.totalorder %s65, 0
    %s67 = scalar_select %p66, %s65, 0
    %s68 = ssub.s32 %s19, %s31
    %s69 = ssub.s32 %s63, %s67
    %s70 = sor.u32 %s68, %s69
    %p71 = scmp.eq.s32.totalorder %s70, 0
    %s73 = sadd.s32 %s72, 1
    %s74 = scalar_select %p71, %s72, %s73
    %p77 = pneg %p71
    %p78 = scmp.eq.s32.totalorder %s12, 1
    %p79 = por %p77, %p78
    %p80 = scmp.ne.s32.totalorder %s72, %s75
    %p81 = scmp.eq.s32.totalorder %s12, 0
    %p82 = por %p80, %p81
    %p83 = scmp.ne.s32.totalorder %s72, %s75
    %p84 = scmp.eq.s32.totalorder %s17, 1
    %p85 = por %p83, %p84
    %p86 = scmp.ne.s32.totalorder %s75, %s76
    %p87 = scmp.eq.s32.totalorder %s17, 0
    %p88 = por %p86, %p87
    %p89 = scmp.ne.s32.totalorder %s75, %s76
    %p90 = scmp.eq.s32.totalorder %s18, 1
    %p91 = por %p89, %p90
    %p93 = scmp.ne.s32.totalorder %s76, %s92
    %p94 = scmp.eq.s32.totalorder %s18, 0
    %p95 = por %p93, %p94
    %s97 = sadd.s32 %s96, 1
    %p100 = scmp.eq.s32.totalorder %s12, 1
    %p101 = scmp.ne.s32.totalorder %s96, %s98
    %p102 = scmp.eq.s32.totalorder %s12, 0
    %p103 = por %p101, %p102
    %p104 = scmp.ne.s32.totalorder %s96, %s98
    %p105 = scmp.eq.s32.totalorder %s17, 1
    %p106 = por %p104, %p105
    %p107 = scmp.ne.s32.totalorder %s98, %s99
    %p108 = scmp.eq.s32.totalorder %s17, 0
    %p109 = por %p107, %p108
    %p110 = scmp.ne.s32.totalorder %s98, %s99
    %p111 = scmp.eq.s32.totalorder %s18, 1
    %p112 = por %p110, %p111
    %p114 = scmp.ne.s32.totalorder %s99, %s113
    %p115 = scmp.eq.s32.totalorder %s18, 0
    %p116 = por %p114, %p115
    %s118 = sadd.s32 %s117, 1
    %p121 = scmp.eq.s32.totalorder %s12, 1
    %p122 = scmp.ne.s32.totalorder %s117, %s119
    %p123 = scmp.eq.s32.totalorder %s12, 0
    %p124 = por %p122, %p123
    %p125 = scmp.ne.s32.totalorder %s117, %s119
    %p126 = scmp.eq.s32.totalorder %s17, 1
    %p127 = por %p125, %p126
    %p128 = scmp.ne.s32.totalorder %s119, %s120
    %p129 = scmp.eq.s32.totalorder %s17, 0
    %p130 = por %p128, %p129
    %p131 = scmp.ne.s32.totalorder %s119, %s120
    %p132 = scmp.eq.s32.totalorder %s18, 1
    %p133 = por %p131, %p132
    %p135 = scmp.ne.s32.totalorder %s120, %s134
    %p136 = scmp.eq.s32.totalorder %s18, 0
    %p137 = por %p135, %p136
    %s139 = sadd.s32 %s138, 1
    %p142 = scmp.eq.s32.totalorder %s12, 1
    %p143 = scmp.ne.s32.totalorder %s138, %s140
    %p144 = scmp.eq.s32.totalorder %s12, 0
    %p145 = por %p143, %p144
    %p146 = scmp.ne.s32.totalorder %s138, %s140
    %p147 = scmp.eq.s32.totalorder %s17, 1
    %p148 = por %p146, %p147
    %p149 = scmp.ne.s32.totalorder %s140, %s141
    %p150 = scmp.eq.s32.totalorder %s17, 0
    %p151 = por %p149, %p150
    %p152 = scmp.ne.s32.totalorder %s140, %s141
    %p153 = scmp.eq.s32.totalorder %s18, 1
    %p154 = por %p152, %p153
    %p156 = scmp.ne.s32.totalorder %s141, %s155
    %p157 = scmp.eq.s32.totalorder %s18, 0
    %p158 = por %p156, %p157
    %s160 = sadd.s32 %s159, 1
    %p163 = scmp.eq.s32.totalorder %s12, 1
    %p164 = scmp.ne.s32.totalorder %s159, %s161
    %p165 = scmp.eq.s32.totalorder %s12, 0
    %p166 = por %p164, %p165
    %p167 = scmp.ne.s32.totalorder %s159, %s161
    %p168 = scmp.eq.s32.totalorder %s17, 1
    %p169 = por %p167, %p168
    %p170 = scmp.ne.s32.totalorder %s161, %s162
    %p171 = scmp.eq.s32.totalorder %s17, 0
    %p172 = por %p170, %p171
    %p173 = scmp.ne.s32.totalorder %s161, %s162
    %p174 = scmp.eq.s32.totalorder %s18, 1
    %p175 = por %p173, %p174
    %p177 = scmp.ne.s32.totalorder %s162, %s176
    %p178 = scmp.eq.s32.totalorder %s18, 0
    %p179 = por %p177, %p178
    %s180 = ssub.s32 %s19, %s31
    %s181 = ssub.s32 %s20, %s27
    %s182 = sor.u32 %s180, %s181
    %p183 = scmp.eq.s32.totalorder %s182, 0
    %s185 = sadd.s32 %s184, 1
    %s186 = scalar_select %p183, %s184, %s185
    %p189 = pneg %p183
    %p190 = scmp.eq.s32.totalorder %s12, 1
    %p191 = por %p189, %p190
    %p192 = scmp.ne.s32.totalorder %s184, %s187
    %p193 = scmp.eq.s32.totalorder %s12, 0
    %p194 = por %p192, %p193
    %p195 = scmp.ne.s32.totalorder %s184, %s187
    %p196 = scmp.eq.s32.totalorder %s17, 1
    %p197 = por %p195, %p196
    %p198 = scmp.ne.s32.totalorder %s187, %s188
    %p199 = scmp.eq.s32.totalorder %s17, 0
    %p200 = por %p198, %p199
    %p201 = scmp.ne.s32.totalorder %s187, %s188
    %p202 = scmp.eq.s32.totalorder %s18, 1
    %p203 = por %p201, %p202
    %p205 = scmp.ne.s32.totalorder %s188, %s204
    %p206 = scmp.eq.s32.totalorder %s18, 0
    %p207 = por %p205, %p206
    %p208 = scmp.le.s32.totalorder 1, %s12
    %p209 = scmp.lt.s32.totalorder %s12, 3
    %p210 = pnand %p208, %p209
    %p211 = pneg %p210
    // Predicated region
    $region9: #{downsample_forward.1} parent=5 // pred_check
      _
    $region10: #{downsample_forward.1} parent=5 // pred_check_branch
      %213 = sbr.rel (%p210) target = $region12
    $region11: #{downsample_forward.1} parent=5 // pred_region
      %s214 = ssub.s32 %s12, 1
      // Predicated region
      $region13: #{downsample_forward.1} parent=11 // pred_check
        %p215 = pneg %p109
      $region14: #{downsample_forward.1} parent=11 // pred_check_branch
        %217 = sbr.rel (%p215) target = $region16
      $region15: #{downsample_forward.1} parent=11 // pred_region
        _
      $region16: #{downsample_forward.1} parent=11 // pred_fallthru
        _
      // Predicated region
      $region17: #{downsample_forward.1} parent=11 // pred_check
        %p218 = pneg %p130
      $region18: #{downsample_forward.1} parent=11 // pred_check_branch
        %220 = sbr.rel (%p218) target = $region20
      $region19: #{downsample_forward.1} parent=11 // pred_region
        _
      $region20: #{downsample_forward.1} parent=11 // pred_fallthru
        _
      // Predicated region
      $region21: #{downsample_forward.1} parent=11 // pred_check
        %p221 = pneg %p151
      $region22: #{downsample_forward.1} parent=11 // pred_check_branch
        %223 = sbr.rel (%p221) target = $region24
      $region23: #{downsample_forward.1} parent=11 // pred_region
        _
      $region24: #{downsample_forward.1} parent=11 // pred_fallthru
        _
      // Predicated region
      $region25: #{downsample_forward.1} parent=11 // pred_check
        %p224 = pneg %p172
      $region26: #{downsample_forward.1} parent=11 // pred_check_branch
        %226 = sbr.rel (%p224) target = $region28
      $region27: #{downsample_forward.1} parent=11 // pred_region
        _
      $region28: #{downsample_forward.1} parent=11 // pred_fallthru
        _
    $region12: #{downsample_forward.1} parent=5 // pred_fallthru
      _
    %p227 = scmp.lt.s32.totalorder %s12, 2
    // Predicated region
    $region29: #{downsample_forward.1} parent=5 // pred_check
      %p228 = pneg %p227
    $region30: #{downsample_forward.1} parent=5 // pred_check_branch
      %230 = sbr.rel (%p228) target = $region32
    $region31: #{downsample_forward.1} parent=5 // pred_region
      // Predicated region
      $region33: #{downsample_forward.1} parent=31 // pred_check
        %p231 = pneg %p46
      $region34: #{downsample_forward.1} parent=31 // pred_check_branch
        %233 = sbr.rel (%p231) target = $region36
      $region35: #{downsample_forward.1} parent=31 // pred_region
        %s234 = smul.u32 16, %s20
        %p235 = scmp.lt.s32.totalorder %s19, 1
        %s236 = scalar_select %p235, %s19, 1
        %p237 = scmp.lt.s32.totalorder %s234, 15
        %s238 = scalar_select %p237, %s234, 15
        %s239 = smul.addr %s236, 16
        %s240 = sadd.s32 %s238, %s239
        %s241 = smul.addr %s240, 8
        %s242 = scalar_lea.vmem %s0, %s241
        %s243 = smul.u32 16, %s20
      $region36: #{downsample_forward.1} parent=31 // pred_fallthru
        _
      // Predicated region
      $region37: #{downsample_forward.1} parent=31 // pred_check
        %p244 = pneg %p82
      $region38: #{downsample_forward.1} parent=31 // pred_check_branch
        %246 = sbr.rel (%p244) target = $region40
      $region39: #{downsample_forward.1} parent=31 // pred_region
        %s247 = smul.u32 %s20, 16
        %s248 = ssub.s32 %s247, 1
        %p249 = scmp.gt.s32.totalorder %s248, 0
        %s250 = scalar_select %p249, %s248, 0
        %p251 = scmp.lt.s32.totalorder %s19, 1
        %s252 = scalar_select %p251, %s19, 1
        %p253 = scmp.lt.s32.totalorder %s250, 15
        %s254 = scalar_select %p253, %s250, 15
        %s255 = smul.addr %s252, 16
        %s256 = sadd.s32 %s254, %s255
        %s257 = smul.addr %s256, 8
        %s258 = scalar_lea.vmem %s1, %s257
        %s259 = smul.u32 %s20, 16
        %s260 = ssub.s32 %s259, 1
        %p261 = scmp.gt.s32.totalorder %s260, 0
        %s262 = scalar_select %p261, %s260, 0
      $region40: #{downsample_forward.1} parent=31 // pred_fallthru
        _
    $region32: #{downsample_forward.1} parent=5 // pred_fallthru
      _
    %p263 = scmp.le.s32.totalorder 1, %s12
    %p264 = scmp.lt.s32.totalorder %s12, 3
    %p265 = pnand %p263, %p264
    %p266 = pneg %p265
    // Predicated region
    $region41: #{downsample_forward.1} parent=5 // pred_check
      _
    $region42: #{downsample_forward.1} parent=5 // pred_check_branch
      %268 = sbr.rel (%p265) target = $region44
    $region43: #{downsample_forward.1} parent=5 // pred_region
      %s269 = ssub.s32 %s12, 1
      %s270 = smul.u32 16, %s22
      %p271 = scmp.lt.s32.totalorder %s21, 1
      %s272 = scalar_select %p271, %s21, 1
      %p273 = scmp.lt.s32.totalorder %s270, 15
      %s274 = scalar_select %p273, %s270, 15
      %s275 = smul.addr %s272, 16
      %s276 = sadd.s32 %s274, %s275
      %s277 = smul.addr %s276, 8
      %s278 = scalar_lea.vmem %s0, %s277
      %p279 = pneg %p52
      %p280 = pneg %p49
      %s281 = smul.u32 %s22, 16
      %s282 = ssub.s32 %s281, 1
      %p283 = scmp.gt.s32.totalorder %s282, 0
      %s284 = scalar_select %p283, %s282, 0
      %p285 = scmp.lt.s32.totalorder %s21, 1
      %s286 = scalar_select %p285, %s21, 1
      %p287 = scmp.lt.s32.totalorder %s284, 15
      %s288 = scalar_select %p287, %s284, 15
      %s289 = smul.addr %s286, 16
      %s290 = sadd.s32 %s288, %s289
      %s291 = smul.addr %s290, 8
      %s292 = scalar_lea.vmem %s1, %s291
      %p293 = pneg %p88
      %p294 = pneg %p85
      %p295 = pneg %p109
      %p296 = pneg %p106
      %p297 = pneg %p130
      %p298 = pneg %p127
      %p299 = pneg %p151
      %p300 = pneg %p148
      %p301 = pneg %p172
      %p302 = pneg %p169
      %p303 = pneg %p200
      %p304 = pneg %p197
      %s305 = smul.u32 8, %s22
      %p306 = scmp.lt.s32.totalorder %s21, 1
      %s307 = scalar_select %p306, %s21, 1
      %p308 = scmp.lt.s32.totalorder %s305, 7
      %s309 = scalar_select %p308, %s305, 7
      %s310 = smul.addr %s307, 8
      %s311 = sadd.s32 %s309, %s310
      %s312 = smul.addr %s311, 8
      %s313 = scalar_lea.vmem %s6, %s312
      %s314 = smul.u32 16, %s22
      %p315 = scmp.lt.s32.totalorder %s21, 1
      %s316 = scalar_select %p315, %s21, 1
      %p317 = scmp.lt.s32.totalorder %s314, 15
      %s318 = scalar_select %p317, %s314, 15
      %s319 = smul.addr %s316, 16
      %s320 = sadd.s32 %s318, %s319
      %s321 = smul.addr %s320, 8
      %s322 = scalar_lea.vmem %s0, %s321
      %s323 = smul.u32 16, %s22
      %s324 = smul.u32 %s22, 16
      %s325 = ssub.s32 %s324, 1
      %p326 = scmp.gt.s32.totalorder %s325, 0
      %s327 = scalar_select %p326, %s325, 0
      %p328 = scmp.lt.s32.totalorder %s21, 1
      %s329 = scalar_select %p328, %s21, 1
      %p330 = scmp.lt.s32.totalorder %s327, 15
      %s331 = scalar_select %p330, %s327, 15
      %s332 = smul.addr %s329, 16
      %s333 = sadd.s32 %s331, %s332
      %s334 = smul.addr %s333, 8
      %s335 = scalar_lea.vmem %s1, %s334
      %s336 = smul.u32 %s22, 16
      %s337 = ssub.s32 %s336, 1
      %p338 = scmp.gt.s32.totalorder %s337, 0
      %s339 = scalar_select %p338, %s337, 0
      %s340 = smul.u32 8, %s22
      %p341 = scmp.lt.s32.totalorder %s21, 1
      %s342 = scalar_select %p341, %s21, 1
      %p343 = scmp.lt.s32.totalorder %s340, 7
      %s344 = scalar_select %p343, %s340, 7
      %s345 = smul.addr %s342, 8
      %s346 = sadd.s32 %s344, %s345
      %s347 = smul.addr %s346, 8
      %s348 = scalar_lea.vmem %s6, %s347
      %s349 = smul.u32 8, %s22
      %v350 = vld [vmem:[%s335] sm:$0xff]
      %352 = vrot.lane.b32.xlu0 %v350, 8
      %v353 = vpop.permute.xlu0 %352
      %vm355 = vcmask 64512
      %v356 = vsel %vm355, 0.0, %v353
      %v357 = vld [vmem:[%s322] sm:$0xff]
      %s358 = scalar_lea.vmem %s322, 8
      %v359 = vld [vmem:[%s358] sm:$0xff]
      %361 = vrot.lane.b32.xlu0 %v359, 8
      %v362 = vpop.permute.xlu0 %361
      %v364 = vsel %vm355, %v357, %v362
      %s365 = scalar_lea.vmem %s322, 16
      %v366 = vld [vmem:[%s365] sm:$0xff]
      %s367 = scalar_lea.vmem %s322, 24
      %v368 = vld [vmem:[%s367] sm:$0xff]
      %370 = vrot.lane.b32.xlu0 %v368, 8
      %v371 = vpop.permute.xlu0 %370
      %v373 = vsel %vm355, %v366, %v371
      %s374 = scalar_lea.vmem %s322, 32
      %v375 = vld [vmem:[%s374] sm:$0xff]
      %s376 = scalar_lea.vmem %s322, 40
      %v377 = vld [vmem:[%s376] sm:$0xff]
      %379 = vrot.lane.b32.xlu0 %v377, 8
      %v380 = vpop.permute.xlu0 %379
      %v382 = vsel %vm355, %v375, %v380
      %s383 = scalar_lea.vmem %s322, 48
      %v384 = vld [vmem:[%s383] sm:$0xff]
      %s385 = scalar_lea.vmem %s322, 56
      %v386 = vld [vmem:[%s385] sm:$0xff]
      %388 = vrot.lane.b32.xlu0 %v386, 8
      %v389 = vpop.permute.xlu0 %388
      %v391 = vsel %vm355, %v384, %v389
      %s392 = scalar_lea.vmem %s322, 64
      %v393 = vld [vmem:[%s392] sm:$0xff]
      %s394 = scalar_lea.vmem %s322, 72
      %v395 = vld [vmem:[%s394] sm:$0xff]
      %397 = vrot.lane.b32.xlu0 %v395, 8
      %v398 = vpop.permute.xlu0 %397
      %v400 = vsel %vm355, %v393, %v398
      %s401 = scalar_lea.vmem %s322, 80
      %v402 = vld [vmem:[%s401] sm:$0xff]
      %s403 = scalar_lea.vmem %s322, 88
      %v404 = vld [vmem:[%s403] sm:$0xff]
      %406 = vrot.lane.b32.xlu0 %v404, 8
      %v407 = vpop.permute.xlu0 %406
      %v409 = vsel %vm355, %v402, %v407
      %s410 = scalar_lea.vmem %s322, 96
      %v411 = vld [vmem:[%s410] sm:$0xff]
      %s412 = scalar_lea.vmem %s322, 104
      %v413 = vld [vmem:[%s412] sm:$0xff]
      %415 = vrot.lane.b32.xlu0 %v413, 8
      %v416 = vpop.permute.xlu0 %415
      %v418 = vsel %vm355, %v411, %v416
      %s419 = scalar_lea.vmem %s322, 112
      %v420 = vld [vmem:[%s419] sm:$0xff]
      %s421 = scalar_lea.vmem %s322, 120
      %v422 = vld [vmem:[%s421] sm:$0xff]
      %424 = vrot.lane.b32.xlu0 %v422, 8
      %v425 = vpop.permute.xlu0 %424
      %v427 = vsel %vm355, %v420, %v425
      %v429 = vrot.slane %v356, 7
      %v432 = vrot.slane %v364, 6
      %v435 = vrot.slane %v373, 5
      %v438 = vrot.slane %v382, 4
      %v441 = vrot.slane %v391, 3
      %v444 = vrot.slane %v400, 2
      %v447 = vrot.slane %v409, 1
      %vm449 = vcmask 1040384
      %v450 = vsel %vm449, 0.0, %v429
      %v451 = vsel %vm449, %v429, 0.0
      %vm452 = vcmask 1041408
      %v453 = vsel %vm452, %v451, %v432
      %v454 = vsel %vm452, %v432, 0.0
      %vm455 = vcmask 1042432
      %v456 = vsel %vm455, %v454, %v435
      %v457 = vsel %vm455, %v435, 0.0
      %vm458 = vcmask 1043456
      %v459 = vsel %vm458, %v457, %v438
      %v460 = vsel %vm458, %v438, 0.0
      %vm461 = vcmask 1044480
      %v462 = vsel %vm461, %v460, %v441
      %v463 = vsel %vm461, %v441, 0.0
      %vm464 = vcmask 1045504
      %v465 = vsel %vm464, %v463, %v444
      %v466 = vsel %vm464, %v444, 0.0
      %vm467 = vcmask 1046528
      %v468 = vsel %vm467, %v466, %v447
      %v469 = vsel %vm467, %v447, 0.0
      %v471 = vrot.slane %v427, 7
      %v473 = vsel %vm449, 0.0, %v471
      %v474 = vld [vmem:[%s2] sm:$0xff]
      %v475 = vld [vmem:[%s2 + $0x8] sm:$0xff]
      %v476 = vld [vmem:[%s3] sm:$0x1]
      %v478 = vlaneseq
      %v479 = vshrl.u32 %v478, 7
      %v480 = vsub.s32 0, %v479
      %v481 = vrot.slane %v476, %v480
      %vm483 = vcmask 130048
      %v485 = vsel %vm483, %v450, 0
      %v488 = vsel %vm483, %v453, 0
      %v491 = vsel %vm483, %v456, 0
      %v494 = vsel %vm483, %v459, 0
      %v497 = vsel %vm483, %v462, 0
      %v500 = vsel %vm483, %v465, 0
      %v503 = vsel %vm483, %v468, 0
      %v506 = vsel %vm483, %v469, 0
      %v509 = vsel %vm483, %v418, 0
      %v512 = vsel %vm483, %v473, 0
      %v514 = vsel %vm483, %v471, 0
      %516 = vmatprep.subr.mxu0 0.0
      %517 = vmatpush1.msra.mxu0 0.0
      %518 = vmatprep.subr.mxu0 0.0
      %519 = vmatpush1.msra.mxu0 0.0
      %520 = vmatprep.subr.mxu0 0.0
      %521 = vmatpush1.msra.mxu0 0.0
      %522 = vmatprep.subr.mxu0 0.0
      %523 = vmatpush1.msra.mxu0 0.0
      %524 = vmatprep.subr.mxu0 0.0
      %525 = vmatpush1.msra.mxu0 0.0
      %526 = vmatprep.subr.mxu0 0.0
      %527 = vmatpush1.msra.mxu0 0.0
      %528 = vmatprep.subr.mxu0 0.0
      %529 = vmatpush1.msra.mxu0 0.0
      %530 = vmatprep.subr.mxu0 0.0
      %531 = vmatpush1.msra.mxu0 0.0
      %532 = vmatprep.subr.mxu0 0.0
      %533 = vmatpush1.msra.mxu0 0.0
      %534 = vmatprep.subr.mxu0 0.0
      %535 = vmatpush1.msra.mxu0 0.0
      %536 = vmatprep.subr.mxu0 0.0
      %537 = vmatpush1.msra.mxu0 0.0
      %538 = vmatprep.subr.mxu0 0.0
      %539 = vmatpush1.msra.mxu0 0.0
      %540 = vmatprep.subr.mxu0 0.0
      %541 = vmatpush1.msra.mxu0 0.0
      %542 = vmatprep.subr.mxu0 0.0
      %543 = vmatpush1.msra.mxu0 0.0
      %544 = vmatprep.subr.mxu0 0.0
      %545 = vmatpush1.msra.mxu0 %v475
      %546 = vmatprep.subr.mxu0 0.0
      %547 = vmatpush1.msra.mxu0 %v474
      %548 = vmatprep.subr.mxu0 0.0
      %549 = vmatpush2.msra.mxu0 0.0
      %550 = vmatprep.subr.mxu0 0.0
      %551 = vmatpush2.msra.mxu0 0.0
      %552 = vmatprep.subr.mxu0 0.0
      %553 = vmatpush2.msra.mxu0 0.0
      %554 = vmatprep.subr.mxu0 0.0
      %555 = vmatpush2.msra.mxu0 0.0
      %556 = vmatprep.subr.mxu0 0.0
      %557 = vmatpush2.msra.mxu0 0.0
      %558 = vmatprep.subr.mxu0 0.0
      %559 = vmatpush2.msra.mxu0 0.0
      %560 = vmatprep.subr.mxu0 0.0
      %561 = vmatpush2.msra.mxu0 0.0
      %562 = vmatprep.subr.mxu0 0.0
      %563 = vmatpush2.msra.mxu0 0.0
      %564 = vmatprep.subr.mxu0 0.0
      %565 = vmatpush2.msra.mxu0 0.0
      %566 = vmatprep.subr.mxu0 0.0
      %567 = vmatpush2.msra.mxu0 0.0
      %568 = vmatprep.subr.mxu0 0.0
      %569 = vmatpush2.msra.mxu0 0.0
      %570 = vmatprep.subr.mxu0 0.0
      %571 = vmatpush2.msra.mxu0 0.0
      %572 = vmatprep.subr.mxu0 0.0
      %573 = vmatpush2.msra.mxu0 0.0
      %574 = vmatprep.subr.mxu0 0.0
      %575 = vmatpush2.msra.mxu0 0.0
      %576 = vmatprep.subr.mxu0 0.0
      %577 = vmatpush2.msra.mxu0 0.0
      %578 = vmatprep.subr.mxu0 0.0
      %579 = vmatpush2.msra.mxu0 0.0
      %580 = vmatprep.mubr.f32.mxu0 0.0
      %581 = vmatmul.mubr.f32.gmra.mxu0 %v485
      %v582 = vpop.f32.mrf.mxu0
      %v583 = vadd.f32 %v481, %v582
      %v584 = vpop.f32.mrf.mxu0
      %585 = vmatprep.mubr.f32.mxu0 0.0
      %586 = vmatmul.mubr.f32.gmra.mxu0 %v488
      %v587 = vpop.f32.mrf.mxu0
      %v588 = vadd.f32 %v481, %v587
      %v589 = vpop.f32.mrf.mxu0
      %590 = vmatprep.mubr.f32.mxu0 0.0
      %591 = vmatmul.mubr.f32.gmra.mxu0 %v491
      %v592 = vpop.f32.mrf.mxu0
      %v593 = vadd.f32 %v481, %v592
      %v594 = vpop.f32.mrf.mxu0
      %595 = vmatprep.mubr.f32.mxu0 0.0
      %596 = vmatmul.mubr.f32.gmra.mxu0 %v494
      %v597 = vpop.f32.mrf.mxu0
      %v598 = vadd.f32 %v481, %v597
      %v599 = vpop.f32.mrf.mxu0
      %600 = vmatprep.mubr.f32.mxu0 0.0
      %601 = vmatmul.mubr.f32.gmra.mxu0 %v497
      %v602 = vpop.f32.mrf.mxu0
      %v603 = vadd.f32 %v481, %v602
      %v604 = vpop.f32.mrf.mxu0
      %605 = vmatprep.mubr.f32.mxu0 0.0
      %606 = vmatmul.mubr.f32.gmra.mxu0 %v500
      %v607 = vpop.f32.mrf.mxu0
      %v608 = vadd.f32 %v481, %v607
      %v609 = vpop.f32.mrf.mxu0
      %610 = vmatprep.mubr.f32.mxu0 0.0
      %611 = vmatmul.mubr.f32.gmra.mxu0 %v503
      %v612 = vpop.f32.mrf.mxu0
      %v613 = vadd.f32 %v481, %v612
      %v614 = vpop.f32.mrf.mxu0
      %615 = vmatprep.mubr.f32.mxu0 0.0
      %616 = vmatmul.mubr.f32.gmra.mxu0 %v506
      %v617 = vpop.f32.mrf.mxu0
      %v618 = vadd.f32 %v481, %v617
      %v619 = vpop.f32.mrf.mxu0
      %620 = vmatprep.mubr.f32.mxu0 0.0
      %621 = vmatmul.mubr.f32.gmra.mxu0 %v509
      %v622 = vpop.f32.mrf.mxu0
      %v623 = vadd.f32 %v481, %v622
      %v624 = vpop.f32.mrf.mxu0
      %625 = vmatprep.mubr.f32.mxu0 0.0
      %626 = vmatmul.mubr.f32.gmra.mxu0 %v512
      %v627 = vpop.f32.mrf.mxu0
      %v628 = vadd.f32 %v481, %v627
      %v629 = vpop.f32.mrf.mxu0
      %630 = vmatprep.mubr.f32.mxu0 0.0
      %631 = vmatmul.mubr.f32.gmra.mxu0 %v514
      %v632 = vpop.f32.mrf.mxu0
      %v633 = vadd.f32 %v481, %v632
      %v634 = vpop.f32.mrf.mxu0
      %635 = vdwg.mxu0
      %v636 = vmul.f32 %v583, 0.70710677
      %v637 = vmul.f32 %v588, 0.70710677
      %v638 = vmul.f32 %v593, 0.70710677
      %v639 = vmul.f32 %v598, 0.70710677
      %v640 = vmul.f32 %v603, 0.70710677
      %v641 = vmul.f32 %v608, 0.70710677
      %v642 = vmul.f32 %v613, 0.70710677
      %v643 = vmul.f32 %v618, 0.70710677
      %v644 = vmul.f32 %v623, 0.70710677
      %v645 = vmul.f32 %v628, 0.70710677
      %v646 = vmul.f32 %v633, 0.70710677
      %v647 = vand.u32 2147483647, %v636
      %v648 = vand.u32 2147483647, %v637
      %v649 = vand.u32 2147483647, %v638
      %v650 = vand.u32 2147483647, %v639
      %v651 = vand.u32 2147483647, %v640
      %v652 = vand.u32 2147483647, %v641
      %v653 = vand.u32 2147483647, %v642
      %v654 = vand.u32 2147483647, %v643
      %v655 = vand.u32 2147483647, %v644
      %v656 = vand.u32 2147483647, %v645
      %v657 = vand.u32 2147483647, %v646
      %vm658 = vcmp.ge.f32.partialorder %v636, 0.0
      %vm659 = vcmp.ge.f32.partialorder %v637, 0.0
      %vm660 = vcmp.ge.f32.partialorder %v638, 0.0
      %vm661 = vcmp.ge.f32.partialorder %v639, 0.0
      %vm662 = vcmp.ge.f32.partialorder %v640, 0.0
      %vm663 = vcmp.ge.f32.partialorder %v641, 0.0
      %vm664 = vcmp.ge.f32.partialorder %v642, 0.0
      %vm665 = vcmp.ge.f32.partialorder %v643, 0.0
      %vm666 = vcmp.ge.f32.partialorder %v644, 0.0
      %vm667 = vcmp.ge.f32.partialorder %v645, 0.0
      %vm668 = vcmp.ge.f32.partialorder %v646, 0.0
      %v669 = vsel %vm658, 1.0, -1.0
      %v670 = vsel %vm659, 1.0, -1.0
      %v671 = vsel %vm660, 1.0, -1.0
      %v672 = vsel %vm661, 1.0, -1.0
      %v673 = vsel %vm662, 1.0, -1.0
      %v674 = vsel %vm663, 1.0, -1.0
      %v675 = vsel %vm664, 1.0, -1.0
      %v676 = vsel %vm665, 1.0, -1.0
      %v677 = vsel %vm666, 1.0, -1.0
      %v678 = vsel %vm667, 1.0, -1.0
      %v679 = vsel %vm668, 1.0, -1.0
      %v680 = vmul.f32 %v647, 0.3275911
      %v681 = vmul.f32 %v648, 0.3275911
      %v682 = vmul.f32 %v649, 0.3275911
      %v683 = vmul.f32 %v650, 0.3275911
      %v684 = vmul.f32 %v651, 0.3275911
      %v685 = vmul.f32 %v652, 0.3275911
      %v686 = vmul.f32 %v653, 0.3275911
      %v687 = vmul.f32 %v654, 0.3275911
      %v688 = vmul.f32 %v655, 0.3275911
      %v689 = vmul.f32 %v656, 0.3275911
      %v690 = vmul.f32 %v657, 0.3275911
      %v691 = vadd.f32 %v680, 1.0
      %v692 = vadd.f32 %v681, 1.0
      %v693 = vadd.f32 %v682, 1.0
      %v694 = vadd.f32 %v683, 1.0
      %v695 = vadd.f32 %v684, 1.0
      %v696 = vadd.f32 %v685, 1.0
      %v697 = vadd.f32 %v686, 1.0
      %v698 = vadd.f32 %v687, 1.0
      %v699 = vadd.f32 %v688, 1.0
      %v700 = vadd.f32 %v689, 1.0
      %v701 = vadd.f32 %v690, 1.0
      %v702 = vrcp.pop %v691
      %v703 = vrcp.pop %v692
      %v704 = vrcp.pop %v693
      %v705 = vrcp.pop %v694
      %v706 = vrcp.pop %v695
      %v707 = vrcp.pop %v696
      %v708 = vrcp.pop %v697
      %v709 = vrcp.pop %v698
      %v710 = vrcp.pop %v699
      %v711 = vrcp.pop %v700
      %v712 = vrcp.pop %v701
      %v713 = vmul.f32 %v702, 1.0614054
      %v714 = vmul.f32 %v703, 1.0614054
      %v715 = vmul.f32 %v704, 1.0614054
      %v716 = vmul.f32 %v705, 1.0614054
      %v717 = vmul.f32 %v706, 1.0614054
      %v718 = vmul.f32 %v707, 1.0614054
      %v719 = vmul.f32 %v708, 1.0614054
      %v720 = vmul.f32 %v709, 1.0614054
      %v721 = vmul.f32 %v710, 1.0614054
      %v722 = vmul.f32 %v711, 1.0614054
      %v723 = vmul.f32 %v712, 1.0614054
      %v724 = vadd.f32 %v713, -1.4531521
      %v725 = vadd.f32 %v714, -1.4531521
      %v726 = vadd.f32 %v715, -1.4531521
      %v727 = vadd.f32 %v716, -1.4531521
      %v728 = vadd.f32 %v717, -1.4531521
      %v729 = vadd.f32 %v718, -1.4531521
      %v730 = vadd.f32 %v719, -1.4531521
      %v731 = vadd.f32 %v720, -1.4531521
      %v732 = vadd.f32 %v721, -1.4531521
      %v733 = vadd.f32 %v722, -1.4531521
      %v734 = vadd.f32 %v723, -1.4531521
      %v735 = vmul.f32 %v724, %v702
      %v736 = vmul.f32 %v725, %v703
      %v737 = vmul.f32 %v726, %v704
      %v738 = vmul.f32 %v727, %v705
      %v739 = vmul.f32 %v728, %v706
      %v740 = vmul.f32 %v729, %v707
      %v741 = vmul.f32 %v730, %v708
      %v742 = vmul.f32 %v731, %v709
      %v743 = vmul.f32 %v732, %v710
      %v744 = vmul.f32 %v733, %v711
      %v745 = vmul.f32 %v734, %v712
      %v746 = vadd.f32 %v735, 1.4214138
      %v747 = vadd.f32 %v736, 1.4214138
      %v748 = vadd.f32 %v737, 1.4214138
      %v749 = vadd.f32 %v738, 1.4214138
      %v750 = vadd.f32 %v739, 1.4214138
      %v751 = vadd.f32 %v740, 1.4214138
      %v752 = vadd.f32 %v741, 1.4214138
      %v753 = vadd.f32 %v742, 1.4214138
      %v754 = vadd.f32 %v743, 1.4214138
      %v755 = vadd.f32 %v744, 1.4214138
      %v756 = vadd.f32 %v745, 1.4214138
      %v757 = vmul.f32 %v746, %v702
      %v758 = vmul.f32 %v747, %v703
      %v759 = vmul.f32 %v748, %v704
      %v760 = vmul.f32 %v749, %v705
      %v761 = vmul.f32 %v750, %v706
      %v762 = vmul.f32 %v751, %v707
      %v763 = vmul.f32 %v752, %v708
      %v764 = vmul.f32 %v753, %v709
      %v765 = vmul.f32 %v754, %v710
      %v766 = vmul.f32 %v755, %v711
      %v767 = vmul.f32 %v756, %v712
      %v768 = vadd.f32 %v757, -0.28449672
      %v769 = vadd.f32 %v758, -0.28449672
      %v770 = vadd.f32 %v759, -0.28449672
      %v771 = vadd.f32 %v760, -0.28449672
      %v772 = vadd.f32 %v761, -0.28449672
      %v773 = vadd.f32 %v762, -0.28449672
      %v774 = vadd.f32 %v763, -0.28449672
      %v775 = vadd.f32 %v764, -0.28449672
      %v776 = vadd.f32 %v765, -0.28449672
      %v777 = vadd.f32 %v766, -0.28449672
      %v778 = vadd.f32 %v767, -0.28449672
      %v779 = vmul.f32 %v768, %v702
      %v780 = vmul.f32 %v769, %v703
      %v781 = vmul.f32 %v770, %v704
      %v782 = vmul.f32 %v771, %v705
      %v783 = vmul.f32 %v772, %v706
      %v784 = vmul.f32 %v773, %v707
      %v785 = vmul.f32 %v774, %v708
      %v786 = vmul.f32 %v775, %v709
      %v787 = vmul.f32 %v776, %v710
      %v788 = vmul.f32 %v777, %v711
      %v789 = vmul.f32 %v778, %v712
      %v790 = vadd.f32 %v779, 0.2548296
      %v791 = vadd.f32 %v780, 0.2548296
      %v792 = vadd.f32 %v781, 0.2548296
      %v793 = vadd.f32 %v782, 0.2548296
      %v794 = vadd.f32 %v783, 0.2548296
      %v795 = vadd.f32 %v784, 0.2548296
      %v796 = vadd.f32 %v785, 0.2548296
      %v797 = vadd.f32 %v786, 0.2548296
      %v798 = vadd.f32 %v787, 0.2548296
      %v799 = vadd.f32 %v788, 0.2548296
      %v800 = vadd.f32 %v789, 0.2548296
      %v801 = vmul.f32 %v790, %v702
      %v802 = vmul.f32 %v791, %v703
      %v803 = vmul.f32 %v792, %v704
      %v804 = vmul.f32 %v793, %v705
      %v805 = vmul.f32 %v794, %v706
      %v806 = vmul.f32 %v795, %v707
      %v807 = vmul.f32 %v796, %v708
      %v808 = vmul.f32 %v797, %v709
      %v809 = vmul.f32 %v798, %v710
      %v810 = vmul.f32 %v799, %v711
      %v811 = vmul.f32 %v800, %v712
      %v812 = vsub.f32 0.0, %v647
      %v813 = vsub.f32 0.0, %v648
      %v814 = vsub.f32 0.0, %v649
      %v815 = vsub.f32 0.0, %v650
      %v816 = vsub.f32 0.0, %v651
      %v817 = vsub.f32 0.0, %v652
      %v818 = vsub.f32 0.0, %v653
      %v819 = vsub.f32 0.0, %v654
      %v820 = vsub.f32 0.0, %v655
      %v821 = vsub.f32 0.0, %v656
      %v822 = vsub.f32 0.0, %v657
      %v823 = vmul.f32 %v812, %v647
      %v824 = vmul.f32 %v813, %v648
      %v825 = vmul.f32 %v814, %v649
      %v826 = vmul.f32 %v815, %v650
      %v827 = vmul.f32 %v816, %v651
      %v828 = vmul.f32 %v817, %v652
      %v829 = vmul.f32 %v818, %v653
      %v830 = vmul.f32 %v819, %v654
      %v831 = vmul.f32 %v820, %v655
      %v832 = vmul.f32 %v821, %v656
      %v833 = vmul.f32 %v822, %v657
      %v834 = vmul.f32 %v823, 1.442695
      %v835 = vpow.pop %v834
      %v836 = vmul.f32 %v824, 1.442695
      %v837 = vpow.pop %v836
      %v838 = vmul.f32 %v825, 1.442695
      %v839 = vpow.pop %v838
      %v840 = vmul.f32 %v826, 1.442695
      %v841 = vpow.pop %v840
      %v842 = vmul.f32 %v827, 1.442695
      %v843 = vpow.pop %v842
      %v844 = vmul.f32 %v828, 1.442695
      %v845 = vpow.pop %v844
      %v846 = vmul.f32 %v829, 1.442695
      %v847 = vpow.pop %v846
      %v848 = vmul.f32 %v830, 1.442695
      %v849 = vpow.pop %v848
      %v850 = vmul.f32 %v831, 1.442695
      %v851 = vpow.pop %v850
      %v852 = vmul.f32 %v832, 1.442695
      %v853 = vpow.pop %v852
      %v854 = vmul.f32 %v833, 1.442695
      %v855 = vpow.pop %v854
      %v856 = vmul.f32 %v801, %v835
      %v857 = vmul.f32 %v802, %v837
      %v858 = vmul.f32 %v803, %v839
      %v859 = vmul.f32 %v804, %v841
      %v860 = vmul.f32 %v805, %v843
      %v861 = vmul.f32 %v806, %v845
      %v862 = vmul.f32 %v807, %v847
      %v863 = vmul.f32 %v808, %v849
      %v864 = vmul.f32 %v809, %v851
      %v865 = vmul.f32 %v810, %v853
      %v866 = vmul.f32 %v811, %v855
      %v867 = vsub.f32 1.0, %v856
      %v868 = vsub.f32 1.0, %v857
      %v869 = vsub.f32 1.0, %v858
      %v870 = vsub.f32 1.0, %v859
      %v871 = vsub.f32 1.0, %v860
      %v872 = vsub.f32 1.0, %v861
      %v873 = vsub.f32 1.0, %v862
      %v874 = vsub.f32 1.0, %v863
      %v875 = vsub.f32 1.0, %v864
      %v876 = vsub.f32 1.0, %v865
      %v877 = vsub.f32 1.0, %v866
      %v878 = vmul.f32 %v669, %v867
      %v879 = vmul.f32 %v670, %v868
      %v880 = vmul.f32 %v671, %v869
      %v881 = vmul.f32 %v672, %v870
      %v882 = vmul.f32 %v673, %v871
      %v883 = vmul.f32 %v674, %v872
      %v884 = vmul.f32 %v675, %v873
      %v885 = vmul.f32 %v676, %v874
      %v886 = vmul.f32 %v677, %v875
      %v887 = vmul.f32 %v678, %v876
      %v888 = vmul.f32 %v679, %v877
      %v889 = vmul.f32 %v583, 0.5
      %v890 = vmul.f32 %v588, 0.5
      %v891 = vmul.f32 %v593, 0.5
      %v892 = vmul.f32 %v598, 0.5
      %v893 = vmul.f32 %v603, 0.5
      %v894 = vmul.f32 %v608, 0.5
      %v895 = vmul.f32 %v613, 0.5
      %v896 = vmul.f32 %v618, 0.5
      %v897 = vmul.f32 %v623, 0.5
      %v898 = vmul.f32 %v628, 0.5
      %v899 = vmul.f32 %v633, 0.5
      %v900 = vadd.f32 %v878, 1.0
      %v901 = vadd.f32 %v879, 1.0
      %v902 = vadd.f32 %v880, 1.0
      %v903 = vadd.f32 %v881, 1.0
      %v904 = vadd.f32 %v882, 1.0
      %v905 = vadd.f32 %v883, 1.0
      %v906 = vadd.f32 %v884, 1.0
      %v907 = vadd.f32 %v885, 1.0
      %v908 = vadd.f32 %v886, 1.0
      %v909 = vadd.f32 %v887, 1.0
      %v910 = vadd.f32 %v888, 1.0
      %v911 = vmul.f32 %v889, %v900
      %v912 = vmul.f32 %v890, %v901
      %v913 = vmul.f32 %v891, %v902
      %v914 = vmul.f32 %v892, %v903
      %v915 = vmul.f32 %v893, %v904
      %v916 = vmul.f32 %v894, %v905
      %v917 = vmul.f32 %v895, %v906
      %v918 = vmul.f32 %v896, %v907
      %v919 = vmul.f32 %v897, %v908
      %v920 = vmul.f32 %v898, %v909
      %v921 = vmul.f32 %v899, %v910
      %v922 = vlaneseq
      %v923 = vshrl.u32 %v922, 7
      %v924 = vadd.s32 %v923, 8
      %vm925 = vcmp.ne.s32.totalorder %v923, 0
      %vm926 = vcmp.ne.s32.totalorder %v924, 0
      %v927 = vsel %vm925, 1, 0
      %v928 = vsel %vm926, 1, 0
      %v929 = vcvt.s32.f32 %v927
      %v930 = vcvt.s32.f32 %v928
      %v933 = vrot.slane %v929, 7
      %v934 = vrot.slane %v930, 7
      %v935 = vsel %vm449, %v933, %v934
      %v938 = vrot.slane %v929, 6
      %v939 = vrot.slane %v930, 6
      %v940 = vsel %vm452, %v938, %v939
      %v943 = vrot.slane %v929, 5
      %v944 = vrot.slane %v930, 5
      %v945 = vsel %vm455, %v943, %v944
      %v948 = vrot.slane %v929, 4
      %v949 = vrot.slane %v930, 4
      %v950 = vsel %vm458, %v948, %v949
      %v953 = vrot.slane %v929, 3
      %v954 = vrot.slane %v930, 3
      %v955 = vsel %vm461, %v953, %v954
      %v958 = vrot.slane %v929, 2
      %v959 = vrot.slane %v930, 2
      %v960 = vsel %vm464, %v958, %v959
      %v963 = vrot.slane %v929, 1
      %v964 = vrot.slane %v930, 1
      %v965 = vsel %vm467, %v963, %v964
      %v968 = vsel %vm449, %v930, %v933
      %v969 = vsel %vm452, %v935, %v938
      %v970 = vsel %vm455, %v940, %v943
      %v971 = vsel %vm458, %v945, %v948
      %v972 = vsel %vm461, %v950, %v953
      %v973 = vsel %vm464, %v955, %v958
      %v974 = vsel %vm467, %v960, %v963
      %v975 = vadd.s32 %v923, 16
      %v976 = vadd.s32 %v923, 24
      %v977 = vadd.s32 %v923, 32
      %v978 = vadd.s32 %v923, 40
      %v979 = vadd.s32 %v923, 48
      %v980 = vadd.s32 %v923, 56
      %v981 = vadd.s32 %v923, 64
      %v982 = vadd.s32 %v923, 72
      %v983 = vadd.s32 %v923, 80
      %p984 = scmp.eq.s32.totalorder %s22, 0
      %s985 = scalar_select %p984, 1, 0
      %s986 = scvt.s32.f32 %s985
      %vm987 = vcmp.lt.s32.totalorder %v923, 9
      %vm988 = vcmp.lt.s32.totalorder %v924, 9
      %vm989 = vcmp.lt.s32.totalorder %v975, 9
      %vm990 = vcmp.lt.s32.totalorder %v976, 9
      %vm991 = vcmp.lt.s32.totalorder %v977, 9
      %vm992 = vcmp.lt.s32.totalorder %v978, 9
      %vm993 = vcmp.lt.s32.totalorder %v979, 9
      %vm994 = vcmp.lt.s32.totalorder %v980, 9
      %vm995 = vcmp.lt.s32.totalorder %v981, 9
      %vm996 = vcmp.lt.s32.totalorder %v982, 9
      %vm997 = vcmp.lt.s32.totalorder %v983, 9
      %v998 = vsel %vm987, 1, 0
      %v999 = vsel %vm988, 1, 0
      %v1000 = vsel %vm989, 1, 0
      %v1001 = vsel %vm990, 1, 0
      %v1002 = vsel %vm991, 1, 0
      %v1003 = vsel %vm992, 1, 0
      %v1004 = vsel %vm993, 1, 0
      %v1005 = vsel %vm994, 1, 0
      %v1006 = vsel %vm995, 1, 0
      %v1007 = vsel %vm996, 1, 0
      %v1008 = vsel %vm997, 1, 0
      %v1009 = vcvt.s32.f32 %v998
      %v1010 = vcvt.s32.f32 %v999
      %v1011 = vcvt.s32.f32 %v1000
      %v1012 = vcvt.s32.f32 %v1001
      %v1013 = vcvt.s32.f32 %v1002
      %v1014 = vcvt.s32.f32 %v1003
      %v1015 = vcvt.s32.f32 %v1004
      %v1016 = vcvt.s32.f32 %v1005
      %v1017 = vcvt.s32.f32 %v1006
      %v1018 = vcvt.s32.f32 %v1007
      %v1019 = vcvt.s32.f32 %v1008
      %v1020 = vstv %s986
      %v1021 = vmul.f32 %v1020, %v1009
      %v1022 = vmul.f32 %v1020, %v1010
      %v1023 = vmul.f32 %v1020, %v1011
      %v1024 = vmul.f32 %v1020, %v1012
      %v1025 = vmul.f32 %v1020, %v1013
      %v1026 = vmul.f32 %v1020, %v1014
      %v1027 = vmul.f32 %v1020, %v1015
      %v1028 = vmul.f32 %v1020, %v1016
      %v1029 = vmul.f32 %v1020, %v1017
      %v1030 = vmul.f32 %v1020, %v1018
      %v1031 = vmul.f32 %v1020, %v1019
      %v1032 = vsub.f32 1.0, %v1021
      %v1033 = vsub.f32 1.0, %v1022
      %v1034 = vsub.f32 1.0, %v1023
      %v1035 = vsub.f32 1.0, %v1024
      %v1036 = vsub.f32 1.0, %v1025
      %v1037 = vsub.f32 1.0, %v1026
      %v1038 = vsub.f32 1.0, %v1027
      %v1039 = vsub.f32 1.0, %v1028
      %v1040 = vsub.f32 1.0, %v1029
      %v1041 = vsub.f32 1.0, %v1030
      %v1042 = vsub.f32 1.0, %v1031
      %v1043 = vmul.f32 %v929, %v1032
      %v1044 = vmul.f32 %v968, %v1033
      %v1045 = vmul.f32 %v969, %v1034
      %v1046 = vmul.f32 %v970, %v1035
      %v1047 = vmul.f32 %v971, %v1036
      %v1048 = vmul.f32 %v972, %v1037
      %v1049 = vmul.f32 %v973, %v1038
      %v1050 = vmul.f32 %v974, %v1039
      %v1051 = vmul.f32 %v965, %v1040
      %v1052 = vmul.f32 %v929, %v1041
      %v1053 = vmul.f32 %v930, %v1042
      %1055 = vset.pattern.permute.xlu0 0
      %1056 = vperm.xlu0 %1055, %v1043
      %v1057 = vpop.permute.xlu0 %1056
      %1060 = vset.pattern.permute.xlu0 0
      %1061 = vperm.xlu0 %1060, %v1044
      %v1062 = vpop.permute.xlu0 %1061
      %1065 = vset.pattern.permute.xlu0 0
      %1066 = vperm.xlu0 %1065, %v1045
      %v1067 = vpop.permute.xlu0 %1066
      %1070 = vset.pattern.permute.xlu0 0
      %1071 = vperm.xlu0 %1070, %v1046
      %v1072 = vpop.permute.xlu0 %1071
      %1075 = vset.pattern.permute.xlu0 0
      %1076 = vperm.xlu0 %1075, %v1047
      %v1077 = vpop.permute.xlu0 %1076
      %1080 = vset.pattern.permute.xlu0 0
      %1081 = vperm.xlu0 %1080, %v1048
      %v1082 = vpop.permute.xlu0 %1081
      %1085 = vset.pattern.permute.xlu0 0
      %1086 = vperm.xlu0 %1085, %v1049
      %v1087 = vpop.permute.xlu0 %1086
      %1090 = vset.pattern.permute.xlu0 0
      %1091 = vperm.xlu0 %1090, %v1050
      %v1092 = vpop.permute.xlu0 %1091
      %1095 = vset.pattern.permute.xlu0 0
      %1096 = vperm.xlu0 %1095, %v1051
      %v1097 = vpop.permute.xlu0 %1096
      %1100 = vset.pattern.permute.xlu0 0
      %1101 = vperm.xlu0 %1100, %v1052
      %v1102 = vpop.permute.xlu0 %1101
      %1105 = vset.pattern.permute.xlu0 0
      %1106 = vperm.xlu0 %1105, %v1053
      %v1107 = vpop.permute.xlu0 %1106
      %v1109 = vmul.f32 %v911, %v1057
      %v1110 = vmul.f32 %v912, %v1062
      %v1111 = vmul.f32 %v913, %v1067
      %v1112 = vmul.f32 %v914, %v1072
      %v1113 = vmul.f32 %v915, %v1077
      %v1114 = vmul.f32 %v916, %v1082
      %v1115 = vmul.f32 %v917, %v1087
      %v1116 = vmul.f32 %v918, %v1092
      %v1117 = vmul.f32 %v919, %v1097
      %v1118 = vmul.f32 %v920, %v1102
      %v1119 = vmul.f32 %v921, %v1107
      %v1120 = vsel %vm449, %v1119, 0.0
      %v1121 = vld [vmem:[%s4] sm:$0xff]
      %v1122 = vld [vmem:[%s4 + $0x8] sm:$0xff]
      %v1123 = vld [vmem:[%s4 + $0x10] sm:$0xff]
      %v1124 = vld [vmem:[%s4 + $0x18] sm:$0xff]
      %v1125 = vld [vmem:[%s4 + $0x20] sm:$0xff]
      %v1126 = vld [vmem:[%s4 + $0x28] sm:$0xff]
      %v1127 = vld [vmem:[%s4 + $0x30] sm:$0xff]
      %v1128 = vld [vmem:[%s4 + $0x38] sm:$0xff]
      %v1129 = vld [vmem:[%s4 + $0x40] sm:$0xff]
      %v1130 = vld [vmem:[%s4 + $0x48] sm:$0xff]
      %v1131 = vld [vmem:[%s4 + $0x50] sm:$0xff]
      %v1132 = vld [vmem:[%s4 + $0x58] sm:$0xff]
      %v1133 = vld [vmem:[%s4 + $0x60] sm:$0xff]
      %v1134 = vld [vmem:[%s4 + $0x68] sm:$0xff]
      %v1135 = vld [vmem:[%s4 + $0x70] sm:$0xff]
      %v1136 = vld [vmem:[%s4 + $0x78] sm:$0xff]
      %s1137 = scalar_lea.vmem %s4, 128
      %v1138 = vld [vmem:[%s1137] sm:$0xff]
      %v1139 = vld [vmem:[%s1137 + $0x8] sm:$0xff]
      %v1140 = vld [vmem:[%s1137 + $0x10] sm:$0xff]
      %v1141 = vld [vmem:[%s1137 + $0x18] sm:$0xff]
      %v1142 = vld [vmem:[%s1137 + $0x20] sm:$0xff]
      %v1143 = vld [vmem:[%s1137 + $0x28] sm:$0xff]
      %v1144 = vld [vmem:[%s1137 + $0x30] sm:$0xff]
      %v1145 = vld [vmem:[%s1137 + $0x38] sm:$0xff]
      %v1146 = vld [vmem:[%s1137 + $0x40] sm:$0xff]
      %v1147 = vld [vmem:[%s1137 + $0x48] sm:$0xff]
      %v1148 = vld [vmem:[%s1137 + $0x50] sm:$0xff]
      %v1149 = vld [vmem:[%s1137 + $0x58] sm:$0xff]
      %v1150 = vld [vmem:[%s1137 + $0x60] sm:$0xff]
      %v1151 = vld [vmem:[%s1137 + $0x68] sm:$0xff]
      %v1152 = vld [vmem:[%s1137 + $0x70] sm:$0xff]
      %v1153 = vld [vmem:[%s1137 + $0x78] sm:$0xff]
      %v1164 = vrot.slane %v1109, 1
      %v1165 = vrot.slane %v1110, 1
      %v1166 = vsel %vm467, %v1164, %v1165
      %v1167 = vrot.slane %v1111, 1
      %v1168 = vsel %vm467, %v1165, %v1167
      %v1169 = vrot.slane %v1112, 1
      %v1170 = vsel %vm467, %v1167, %v1169
      %v1171 = vrot.slane %v1113, 1
      %v1172 = vsel %vm467, %v1169, %v1171
      %v1173 = vrot.slane %v1114, 1
      %v1174 = vsel %vm467, %v1171, %v1173
      %v1175 = vrot.slane %v1115, 1
      %v1176 = vsel %vm467, %v1173, %v1175
      %v1177 = vrot.slane %v1116, 1
      %v1178 = vsel %vm467, %v1175, %v1177
      %v1179 = vrot.slane %v1117, 1
      %v1180 = vsel %vm467, %v1177, %v1179
      %v1181 = vrot.slane %v1118, 1
      %v1182 = vsel %vm467, %v1179, %v1181
      %1192 = vmatprep.subr.mxu0 0.0
      %1193 = vmatpush1.msra.mxu0 %v1153
      %1194 = vmatprep.subr.mxu0 0.0
      %1195 = vmatpush1.msra.mxu0 %v1152
      %1196 = vmatprep.subr.mxu0 0.0
      %1197 = vmatpush1.msra.mxu0 %v1151
      %1198 = vmatprep.subr.mxu0 0.0
      %1199 = vmatpush1.msra.mxu0 %v1150
      %1200 = vmatprep.subr.mxu0 0.0
      %1201 = vmatpush1.msra.mxu0 %v1149
      %1202 = vmatprep.subr.mxu0 0.0
      %1203 = vmatpush1.msra.mxu0 %v1148
      %1204 = vmatprep.subr.mxu0 0.0
      %1205 = vmatpush1.msra.mxu0 %v1147
      %1206 = vmatprep.subr.mxu0 0.0
      %1207 = vmatpush1.msra.mxu0 %v1146
      %1208 = vmatprep.subr.mxu0 0.0
      %1209 = vmatpush1.msra.mxu0 %v1145
      %1210 = vmatprep.subr.mxu0 0.0
      %1211 = vmatpush1.msra.mxu0 %v1144
      %1212 = vmatprep.subr.mxu0 0.0
      %1213 = vmatpush1.msra.mxu0 %v1143
      %1214 = vmatprep.subr.mxu0 0.0
      %1215 = vmatpush1.msra.mxu0 %v1142
      %1216 = vmatprep.subr.mxu0 0.0
      %1217 = vmatpush1.msra.mxu0 %v1141
      %1218 = vmatprep.subr.mxu0 0.0
      %1219 = vmatpush1.msra.mxu0 %v1140
      %1220 = vmatprep.subr.mxu0 0.0
      %1221 = vmatpush1.msra.mxu0 %v1139
      %1222 = vmatprep.subr.mxu0 0.0
      %1223 = vmatpush1.msra.mxu0 %v1138
      %1224 = vmatprep.subr.mxu0 0.0
      %1225 = vmatpush2.msra.mxu0 0.0
      %1226 = vmatprep.subr.mxu0 0.0
      %1227 = vmatpush2.msra.mxu0 0.0
      %1228 = vmatprep.subr.mxu0 0.0
      %1229 = vmatpush2.msra.mxu0 0.0
      %1230 = vmatprep.subr.mxu0 0.0
      %1231 = vmatpush2.msra.mxu0 0.0
      %1232 = vmatprep.subr.mxu0 0.0
      %1233 = vmatpush2.msra.mxu0 0.0
      %1234 = vmatprep.subr.mxu0 0.0
      %1235 = vmatpush2.msra.mxu0 0.0
      %1236 = vmatprep.subr.mxu0 0.0
      %1237 = vmatpush2.msra.mxu0 0.0
      %1238 = vmatprep.subr.mxu0 0.0
      %1239 = vmatpush2.msra.mxu0 0.0
      %1240 = vmatprep.subr.mxu0 0.0
      %1241 = vmatpush2.msra.mxu0 0.0
      %1242 = vmatprep.subr.mxu0 0.0
      %1243 = vmatpush2.msra.mxu0 0.0
      %1244 = vmatprep.subr.mxu0 0.0
      %1245 = vmatpush2.msra.mxu0 0.0
      %1246 = vmatprep.subr.mxu0 0.0
      %1247 = vmatpush2.msra.mxu0 0.0
      %1248 = vmatprep.subr.mxu0 0.0
      %1249 = vmatpush2.msra.mxu0 0.0
      %1250 = vmatprep.subr.mxu0 0.0
      %1251 = vmatpush2.msra.mxu0 0.0
      %1252 = vmatprep.subr.mxu0 0.0
      %1253 = vmatpush2.msra.mxu0 0.0
      %1254 = vmatprep.subr.mxu0 0.0
      %1255 = vmatpush2.msra.mxu0 0.0
      %1256 = vmatprep.mubr.f32.mxu0 0.0
      %1257 = vmatmul.mubr.f32.gmra.mxu0 %v1166
      %v1258 = vpop.f32.mrf.mxu0
      %v1259 = vadd.f32 0.0, %v1258
      %v1260 = vpop.f32.mrf.mxu0
      %1261 = vmatprep.mubr.f32.mxu0 0.0
      %1262 = vmatmul.mubr.f32.gmra.mxu0 %v1168
      %v1263 = vpop.f32.mrf.mxu0
      %v1264 = vadd.f32 0.0, %v1263
      %v1265 = vpop.f32.mrf.mxu0
      %1266 = vmatprep.mubr.f32.mxu0 0.0
      %1267 = vmatmul.mubr.f32.gmra.mxu0 %v1170
      %v1268 = vpop.f32.mrf.mxu0
      %v1269 = vadd.f32 0.0, %v1268
      %v1270 = vpop.f32.mrf.mxu0
      %1271 = vmatprep.mubr.f32.mxu0 0.0
      %1272 = vmatmul.mubr.f32.gmra.mxu0 %v1172
      %v1273 = vpop.f32.mrf.mxu0
      %v1274 = vadd.f32 0.0, %v1273
      %v1275 = vpop.f32.mrf.mxu0
      %1276 = vmatprep.mubr.f32.mxu0 0.0
      %1277 = vmatmul.mubr.f32.gmra.mxu0 %v1174
      %v1278 = vpop.f32.mrf.mxu0
      %v1279 = vadd.f32 0.0, %v1278
      %v1280 = vpop.f32.mrf.mxu0
      %1281 = vmatprep.mubr.f32.mxu0 0.0
      %1282 = vmatmul.mubr.f32.gmra.mxu0 %v1176
      %v1283 = vpop.f32.mrf.mxu0
      %v1284 = vadd.f32 0.0, %v1283
      %v1285 = vpop.f32.mrf.mxu0
      %1286 = vmatprep.mubr.f32.mxu0 0.0
      %1287 = vmatmul.mubr.f32.gmra.mxu0 %v1178
      %v1288 = vpop.f32.mrf.mxu0
      %v1289 = vadd.f32 0.0, %v1288
      %v1290 = vpop.f32.mrf.mxu0
      %1291 = vmatprep.mubr.f32.mxu0 0.0
      %1292 = vmatmul.mubr.f32.gmra.mxu0 %v1180
      %v1293 = vpop.f32.mrf.mxu0
      %v1294 = vadd.f32 0.0, %v1293
      %v1295 = vpop.f32.mrf.mxu0
      %1296 = vmatprep.mubr.f32.mxu0 0.0
      %1297 = vmatmul.mubr.f32.gmra.mxu0 %v1182
      %v1298 = vpop.f32.mrf.mxu0
      %v1299 = vadd.f32 0.0, %v1298
      %v1300 = vpop.f32.mrf.mxu0
      %1301 = vdwg.mxu0
      %1302 = vmatprep.subr.mxu0 0.0
      %1303 = vmatpush1.msra.mxu0 %v1136
      %1304 = vmatprep.subr.mxu0 0.0
      %1305 = vmatpush1.msra.mxu0 %v1135
      %1306 = vmatprep.subr.mxu0 0.0
      %1307 = vmatpush1.msra.mxu0 %v1134
      %1308 = vmatprep.subr.mxu0 0.0
      %1309 = vmatpush1.msra.mxu0 %v1133
      %1310 = vmatprep.subr.mxu0 0.0
      %1311 = vmatpush1.msra.mxu0 %v1132
      %1312 = vmatprep.subr.mxu0 0.0
      %1313 = vmatpush1.msra.mxu0 %v1131
      %1314 = vmatprep.subr.mxu0 0.0
      %1315 = vmatpush1.msra.mxu0 %v1130
      %1316 = vmatprep.subr.mxu0 0.0
      %1317 = vmatpush1.msra.mxu0 %v1129
      %1318 = vmatprep.subr.mxu0 0.0
      %1319 = vmatpush1.msra.mxu0 %v1128
      %1320 = vmatprep.subr.mxu0 0.0
      %1321 = vmatpush1.msra.mxu0 %v1127
      %1322 = vmatprep.subr.mxu0 0.0
      %1323 = vmatpush1.msra.mxu0 %v1126
      %1324 = vmatprep.subr.mxu0 0.0
      %1325 = vmatpush1.msra.mxu0 %v1125
      %1326 = vmatprep.subr.mxu0 0.0
      %1327 = vmatpush1.msra.mxu0 %v1124
      %1328 = vmatprep.subr.mxu0 0.0
      %1329 = vmatpush1.msra.mxu0 %v1123
      %1330 = vmatprep.subr.mxu0 0.0
      %1331 = vmatpush1.msra.mxu0 %v1122
      %1332 = vmatprep.subr.mxu0 0.0
      %1333 = vmatpush1.msra.mxu0 %v1121
      %1334 = vmatprep.subr.mxu0 0.0
      %1335 = vmatpush2.msra.mxu0 0.0
      %1336 = vmatprep.subr.mxu0 0.0
      %1337 = vmatpush2.msra.mxu0 0.0
      %1338 = vmatprep.subr.mxu0 0.0
      %1339 = vmatpush2.msra.mxu0 0.0
      %1340 = vmatprep.subr.mxu0 0.0
      %1341 = vmatpush2.msra.mxu0 0.0
      %1342 = vmatprep.subr.mxu0 0.0
      %1343 = vmatpush2.msra.mxu0 0.0
      %1344 = vmatprep.subr.mxu0 0.0
      %1345 = vmatpush2.msra.mxu0 0.0
      %1346 = vmatprep.subr.mxu0 0.0
      %1347 = vmatpush2.msra.mxu0 0.0
      %1348 = vmatprep.subr.mxu0 0.0
      %1349 = vmatpush2.msra.mxu0 0.0
      %1350 = vmatprep.subr.mxu0 0.0
      %1351 = vmatpush2.msra.mxu0 0.0
      %1352 = vmatprep.subr.mxu0 0.0
      %1353 = vmatpush2.msra.mxu0 0.0
      %1354 = vmatprep.subr.mxu0 0.0
      %1355 = vmatpush2.msra.mxu0 0.0
      %1356 = vmatprep.subr.mxu0 0.0
      %1357 = vmatpush2.msra.mxu0 0.0
      %1358 = vmatprep.subr.mxu0 0.0
      %1359 = vmatpush2.msra.mxu0 0.0
      %1360 = vmatprep.subr.mxu0 0.0
      %1361 = vmatpush2.msra.mxu0 0.0
      %1362 = vmatprep.subr.mxu0 0.0
      %1363 = vmatpush2.msra.mxu0 0.0
      %1364 = vmatprep.subr.mxu0 0.0
      %1365 = vmatpush2.msra.mxu0 0.0
      %1366 = vmatprep.mubr.f32.mxu0 0.0
      %1367 = vmatmul.mubr.f32.gmra.mxu0 %v1109
      %v1368 = vpop.f32.mrf.mxu0
      %v1369 = vadd.f32 %v1259, %v1368
      %v1370 = vpop.f32.mrf.mxu0
      %1371 = vmatprep.mubr.f32.mxu0 0.0
      %1372 = vmatmul.mubr.f32.gmra.mxu0 %v1110
      %v1373 = vpop.f32.mrf.mxu0
      %v1374 = vadd.f32 %v1264, %v1373
      %v1375 = vpop.f32.mrf.mxu0
      %1376 = vmatprep.mubr.f32.mxu0 0.0
      %1377 = vmatmul.mubr.f32.gmra.mxu0 %v1111
      %v1378 = vpop.f32.mrf.mxu0
      %v1379 = vadd.f32 %v1269, %v1378
      %v1380 = vpop.f32.mrf.mxu0
      %1381 = vmatprep.mubr.f32.mxu0 0.0
      %1382 = vmatmul.mubr.f32.gmra.mxu0 %v1112
      %v1383 = vpop.f32.mrf.mxu0
      %v1384 = vadd.f32 %v1274, %v1383
      %v1385 = vpop.f32.mrf.mxu0
      %1386 = vmatprep.mubr.f32.mxu0 0.0
      %1387 = vmatmul.mubr.f32.gmra.mxu0 %v1113
      %v1388 = vpop.f32.mrf.mxu0
      %v1389 = vadd.f32 %v1279, %v1388
      %v1390 = vpop.f32.mrf.mxu0
      %1391 = vmatprep.mubr.f32.mxu0 0.0
      %1392 = vmatmul.mubr.f32.gmra.mxu0 %v1114
      %v1393 = vpop.f32.mrf.mxu0
      %v1394 = vadd.f32 %v1284, %v1393
      %v1395 = vpop.f32.mrf.mxu0
      %1396 = vmatprep.mubr.f32.mxu0 0.0
      %1397 = vmatmul.mubr.f32.gmra.mxu0 %v1115
      %v1398 = vpop.f32.mrf.mxu0
      %v1399 = vadd.f32 %v1289, %v1398
      %v1400 = vpop.f32.mrf.mxu0
      %1401 = vmatprep.mubr.f32.mxu0 0.0
      %1402 = vmatmul.mubr.f32.gmra.mxu0 %v1116
      %v1403 = vpop.f32.mrf.mxu0
      %v1404 = vadd.f32 %v1294, %v1403
      %v1405 = vpop.f32.mrf.mxu0
      %1406 = vmatprep.mubr.f32.mxu0 0.0
      %1407 = vmatmul.mubr.f32.gmra.mxu0 %v1117
      %v1408 = vpop.f32.mrf.mxu0
      %v1409 = vadd.f32 %v1299, %v1408
      %v1410 = vpop.f32.mrf.mxu0
      %1411 = vdwg.mxu0
      %s1412 = scalar_lea.vmem %s4, 256
      %v1413 = vld [vmem:[%s1412] sm:$0xff]
      %v1414 = vld [vmem:[%s1412 + $0x8] sm:$0xff]
      %v1415 = vld [vmem:[%s1412 + $0x10] sm:$0xff]
      %v1416 = vld [vmem:[%s1412 + $0x18] sm:$0xff]
      %v1417 = vld [vmem:[%s1412 + $0x20] sm:$0xff]
      %v1418 = vld [vmem:[%s1412 + $0x28] sm:$0xff]
      %v1419 = vld [vmem:[%s1412 + $0x30] sm:$0xff]
      %v1420 = vld [vmem:[%s1412 + $0x38] sm:$0xff]
      %v1421 = vld [vmem:[%s1412 + $0x40] sm:$0xff]
      %v1422 = vld [vmem:[%s1412 + $0x48] sm:$0xff]
      %v1423 = vld [vmem:[%s1412 + $0x50] sm:$0xff]
      %v1424 = vld [vmem:[%s1412 + $0x58] sm:$0xff]
      %v1425 = vld [vmem:[%s1412 + $0x60] sm:$0xff]
      %v1426 = vld [vmem:[%s1412 + $0x68] sm:$0xff]
      %v1427 = vld [vmem:[%s1412 + $0x70] sm:$0xff]
      %v1428 = vld [vmem:[%s1412 + $0x78] sm:$0xff]
      %v1430 = vrot.slane %v1120, 1
      %v1431 = vsel %vm467, %v1181, %v1430
      %1433 = vmatprep.subr.mxu0 0.0
      %1434 = vmatpush1.msra.mxu0 %v1428
      %1435 = vmatprep.subr.mxu0 0.0
      %1436 = vmatpush1.msra.mxu0 %v1427
      %1437 = vmatprep.subr.mxu0 0.0
      %1438 = vmatpush1.msra.mxu0 %v1426
      %1439 = vmatprep.subr.mxu0 0.0
      %1440 = vmatpush1.msra.mxu0 %v1425
      %1441 = vmatprep.subr.mxu0 0.0
      %1442 = vmatpush1.msra.mxu0 %v1424
      %1443 = vmatprep.subr.mxu0 0.0
      %1444 = vmatpush1.msra.mxu0 %v1423
      %1445 = vmatprep.subr.mxu0 0.0
      %1446 = vmatpush1.msra.mxu0 %v1422
      %1447 = vmatprep.subr.mxu0 0.0
      %1448 = vmatpush1.msra.mxu0 %v1421
      %1449 = vmatprep.subr.mxu0 0.0
      %1450 = vmatpush1.msra.mxu0 %v1420
      %1451 = vmatprep.subr.mxu0 0.0
      %1452 = vmatpush1.msra.mxu0 %v1419
      %1453 = vmatprep.subr.mxu0 0.0
      %1454 = vmatpush1.msra.mxu0 %v1418
      %1455 = vmatprep.subr.mxu0 0.0
      %1456 = vmatpush1.msra.mxu0 %v1417
      %1457 = vmatprep.subr.mxu0 0.0
      %1458 = vmatpush1.msra.mxu0 %v1416
      %1459 = vmatprep.subr.mxu0 0.0
      %1460 = vmatpush1.msra.mxu0 %v1415
      %1461 = vmatprep.subr.mxu0 0.0
      %1462 = vmatpush1.msra.mxu0 %v1414
      %1463 = vmatprep.subr.mxu0 0.0
      %1464 = vmatpush1.msra.mxu0 %v1413
      %1465 = vmatprep.subr.mxu0 0.0
      %1466 = vmatpush2.msra.mxu0 0.0
      %1467 = vmatprep.subr.mxu0 0.0
      %1468 = vmatpush2.msra.mxu0 0.0
      %1469 = vmatprep.subr.mxu0 0.0
      %1470 = vmatpush2.msra.mxu0 0.0
      %1471 = vmatprep.subr.mxu0 0.0
      %1472 = vmatpush2.msra.mxu0 0.0
      %1473 = vmatprep.subr.mxu0 0.0
      %1474 = vmatpush2.msra.mxu0 0.0
      %1475 = vmatprep.subr.mxu0 0.0
      %1476 = vmatpush2.msra.mxu0 0.0
      %1477 = vmatprep.subr.mxu0 0.0
      %1478 = vmatpush2.msra.mxu0 0.0
      %1479 = vmatprep.subr.mxu0 0.0
      %1480 = vmatpush2.msra.mxu0 0.0
      %1481 = vmatprep.subr.mxu0 0.0
      %1482 = vmatpush2.msra.mxu0 0.0
      %1483 = vmatprep.subr.mxu0 0.0
      %1484 = vmatpush2.msra.mxu0 0.0
      %1485 = vmatprep.subr.mxu0 0.0
      %1486 = vmatpush2.msra.mxu0 0.0
      %1487 = vmatprep.subr.mxu0 0.0
      %1488 = vmatpush2.msra.mxu0 0.0
      %1489 = vmatprep.subr.mxu0 0.0
      %1490 = vmatpush2.msra.mxu0 0.0
      %1491 = vmatprep.subr.mxu0 0.0
      %1492 = vmatpush2.msra.mxu0 0.0
      %1493 = vmatprep.subr.mxu0 0.0
      %1494 = vmatpush2.msra.mxu0 0.0
      %1495 = vmatprep.subr.mxu0 0.0
      %1496 = vmatpush2.msra.mxu0 0.0
      %1497 = vmatprep.mubr.f32.mxu0 0.0
      %1498 = vmatmul.mubr.f32.gmra.mxu0 %v1168
      %v1499 = vpop.f32.mrf.mxu0
      %v1500 = vadd.f32 0.0, %v1499
      %v1501 = vpop.f32.mrf.mxu0
      %1502 = vmatprep.mubr.f32.mxu0 0.0
      %1503 = vmatmul.mubr.f32.gmra.mxu0 %v1170
      %v1504 = vpop.f32.mrf.mxu0
      %v1505 = vadd.f32 0.0, %v1504
      %v1506 = vpop.f32.mrf.mxu0
      %1507 = vmatprep.mubr.f32.mxu0 0.0
      %1508 = vmatmul.mubr.f32.gmra.mxu0 %v1172
      %v1509 = vpop.f32.mrf.mxu0
      %v1510 = vadd.f32 0.0, %v1509
      %v1511 = vpop.f32.mrf.mxu0
      %1512 = vmatprep.mubr.f32.mxu0 0.0
      %1513 = vmatmul.mubr.f32.gmra.mxu0 %v1174
      %v1514 = vpop.f32.mrf.mxu0
      %v1515 = vadd.f32 0.0, %v1514
      %v1516 = vpop.f32.mrf.mxu0
      %1517 = vmatprep.mubr.f32.mxu0 0.0
      %1518 = vmatmul.mubr.f32.gmra.mxu0 %v1176
      %v1519 = vpop.f32.mrf.mxu0
      %v1520 = vadd.f32 0.0, %v1519
      %v1521 = vpop.f32.mrf.mxu0
      %1522 = vmatprep.mubr.f32.mxu0 0.0
      %1523 = vmatmul.mubr.f32.gmra.mxu0 %v1178
      %v1524 = vpop.f32.mrf.mxu0
      %v1525 = vadd.f32 0.0, %v1524
      %v1526 = vpop.f32.mrf.mxu0
      %1527 = vmatprep.mubr.f32.mxu0 0.0
      %1528 = vmatmul.mubr.f32.gmra.mxu0 %v1180
      %v1529 = vpop.f32.mrf.mxu0
      %v1530 = vadd.f32 0.0, %v1529
      %v1531 = vpop.f32.mrf.mxu0
      %1532 = vmatprep.mubr.f32.mxu0 0.0
      %1533 = vmatmul.mubr.f32.gmra.mxu0 %v1182
      %v1534 = vpop.f32.mrf.mxu0
      %v1535 = vadd.f32 0.0, %v1534
      %v1536 = vpop.f32.mrf.mxu0
      %1537 = vmatprep.mubr.f32.mxu0 0.0
      %1538 = vmatmul.mubr.f32.gmra.mxu0 %v1431
      %v1539 = vpop.f32.mrf.mxu0
      %v1540 = vadd.f32 0.0, %v1539
      %v1541 = vpop.f32.mrf.mxu0
      %1542 = vdwg.mxu0
      %v1543 = vadd.f32 %v1369, %v1500
      %v1544 = vadd.f32 %v1374, %v1505
      %v1545 = vadd.f32 %v1379, %v1510
      %v1546 = vadd.f32 %v1384, %v1515
      %v1547 = vadd.f32 %v1389, %v1520
      %v1548 = vadd.f32 %v1394, %v1525
      %v1549 = vadd.f32 %v1399, %v1530
      %v1550 = vadd.f32 %v1404, %v1535
      %v1551 = vadd.f32 %v1409, %v1540
      %s1552 = scalar_lea.vmem %s4, 384
      %v1553 = vld [vmem:[%s1552] sm:$0xff]
      %v1554 = vld [vmem:[%s1552 + $0x8] sm:$0xff]
      %v1555 = vld [vmem:[%s1552 + $0x10] sm:$0xff]
      %v1556 = vld [vmem:[%s1552 + $0x18] sm:$0xff]
      %v1557 = vld [vmem:[%s1552 + $0x20] sm:$0xff]
      %v1558 = vld [vmem:[%s1552 + $0x28] sm:$0xff]
      %v1559 = vld [vmem:[%s1552 + $0x30] sm:$0xff]
      %v1560 = vld [vmem:[%s1552 + $0x38] sm:$0xff]
      %v1561 = vld [vmem:[%s1552 + $0x40] sm:$0xff]
      %v1562 = vld [vmem:[%s1552 + $0x48] sm:$0xff]
      %v1563 = vld [vmem:[%s1552 + $0x50] sm:$0xff]
      %v1564 = vld [vmem:[%s1552 + $0x58] sm:$0xff]
      %v1565 = vld [vmem:[%s1552 + $0x60] sm:$0xff]
      %v1566 = vld [vmem:[%s1552 + $0x68] sm:$0xff]
      %v1567 = vld [vmem:[%s1552 + $0x70] sm:$0xff]
      %v1568 = vld [vmem:[%s1552 + $0x78] sm:$0xff]
      %v1569 = vrot.slane %v1110, 2
      %v1570 = vrot.slane %v1111, 2
      %v1571 = vsel %vm464, %v1569, %v1570
      %v1572 = vrot.slane %v1112, 2
      %v1573 = vsel %vm464, %v1570, %v1572
      %v1574 = vrot.slane %v1113, 2
      %v1575 = vsel %vm464, %v1572, %v1574
      %v1576 = vrot.slane %v1114, 2
      %v1577 = vsel %vm464, %v1574, %v1576
      %v1578 = vrot.slane %v1115, 2
      %v1579 = vsel %vm464, %v1576, %v1578
      %v1580 = vrot.slane %v1116, 2
      %v1581 = vsel %vm464, %v1578, %v1580
      %v1582 = vrot.slane %v1117, 2
      %v1583 = vsel %vm464, %v1580, %v1582
      %v1584 = vrot.slane %v1118, 2
      %v1585 = vsel %vm464, %v1582, %v1584
      %v1586 = vrot.slane %v1120, 2
      %v1587 = vsel %vm464, %v1584, %v1586
      %1597 = vmatprep.subr.mxu0 0.0
      %1598 = vmatpush1.msra.mxu0 %v1568
      %1599 = vmatprep.subr.mxu0 0.0
      %1600 = vmatpush1.msra.mxu0 %v1567
      %1601 = vmatprep.subr.mxu0 0.0
      %1602 = vmatpush1.msra.mxu0 %v1566
      %1603 = vmatprep.subr.mxu0 0.0
      %1604 = vmatpush1.msra.mxu0 %v1565
      %1605 = vmatprep.subr.mxu0 0.0
      %1606 = vmatpush1.msra.mxu0 %v1564
      %1607 = vmatprep.subr.mxu0 0.0
      %1608 = vmatpush1.msra.mxu0 %v1563
      %1609 = vmatprep.subr.mxu0 0.0
      %1610 = vmatpush1.msra.mxu0 %v1562
      %1611 = vmatprep.subr.mxu0 0.0
      %1612 = vmatpush1.msra.mxu0 %v1561
      %1613 = vmatprep.subr.mxu0 0.0
      %1614 = vmatpush1.msra.mxu0 %v1560
      %1615 = vmatprep.subr.mxu0 0.0
      %1616 = vmatpush1.msra.mxu0 %v1559
      %1617 = vmatprep.subr.mxu0 0.0
      %1618 = vmatpush1.msra.mxu0 %v1558
      %1619 = vmatprep.subr.mxu0 0.0
      %1620 = vmatpush1.msra.mxu0 %v1557
      %1621 = vmatprep.subr.mxu0 0.0
      %1622 = vmatpush1.msra.mxu0 %v1556
      %1623 = vmatprep.subr.mxu0 0.0
      %1624 = vmatpush1.msra.mxu0 %v1555
      %1625 = vmatprep.subr.mxu0 0.0
      %1626 = vmatpush1.msra.mxu0 %v1554
      %1627 = vmatprep.subr.mxu0 0.0
      %1628 = vmatpush1.msra.mxu0 %v1553
      %1629 = vmatprep.subr.mxu0 0.0
      %1630 = vmatpush2.msra.mxu0 0.0
      %1631 = vmatprep.subr.mxu0 0.0
      %1632 = vmatpush2.msra.mxu0 0.0
      %1633 = vmatprep.subr.mxu0 0.0
      %1634 = vmatpush2.msra.mxu0 0.0
      %1635 = vmatprep.subr.mxu0 0.0
      %1636 = vmatpush2.msra.mxu0 0.0
      %1637 = vmatprep.subr.mxu0 0.0
      %1638 = vmatpush2.msra.mxu0 0.0
      %1639 = vmatprep.subr.mxu0 0.0
      %1640 = vmatpush2.msra.mxu0 0.0
      %1641 = vmatprep.subr.mxu0 0.0
      %1642 = vmatpush2.msra.mxu0 0.0
      %1643 = vmatprep.subr.mxu0 0.0
      %1644 = vmatpush2.msra.mxu0 0.0
      %1645 = vmatprep.subr.mxu0 0.0
      %1646 = vmatpush2.msra.mxu0 0.0
      %1647 = vmatprep.subr.mxu0 0.0
      %1648 = vmatpush2.msra.mxu0 0.0
      %1649 = vmatprep.subr.mxu0 0.0
      %1650 = vmatpush2.msra.mxu0 0.0
      %1651 = vmatprep.subr.mxu0 0.0
      %1652 = vmatpush2.msra.mxu0 0.0
      %1653 = vmatprep.subr.mxu0 0.0
      %1654 = vmatpush2.msra.mxu0 0.0
      %1655 = vmatprep.subr.mxu0 0.0
      %1656 = vmatpush2.msra.mxu0 0.0
      %1657 = vmatprep.subr.mxu0 0.0
      %1658 = vmatpush2.msra.mxu0 0.0
      %1659 = vmatprep.subr.mxu0 0.0
      %1660 = vmatpush2.msra.mxu0 0.0
      %1661 = vmatprep.mubr.f32.mxu0 0.0
      %1662 = vmatmul.mubr.f32.gmra.mxu0 %v1571
      %v1663 = vpop.f32.mrf.mxu0
      %v1664 = vadd.f32 0.0, %v1663
      %v1665 = vpop.f32.mrf.mxu0
      %1666 = vmatprep.mubr.f32.mxu0 0.0
      %1667 = vmatmul.mubr.f32.gmra.mxu0 %v1573
      %v1668 = vpop.f32.mrf.mxu0
      %v1669 = vadd.f32 0.0, %v1668
      %v1670 = vpop.f32.mrf.mxu0
      %1671 = vmatprep.mubr.f32.mxu0 0.0
      %1672 = vmatmul.mubr.f32.gmra.mxu0 %v1575
      %v1673 = vpop.f32.mrf.mxu0
      %v1674 = vadd.f32 0.0, %v1673
      %v1675 = vpop.f32.mrf.mxu0
      %1676 = vmatprep.mubr.f32.mxu0 0.0
      %1677 = vmatmul.mubr.f32.gmra.mxu0 %v1577
      %v1678 = vpop.f32.mrf.mxu0
      %v1679 = vadd.f32 0.0, %v1678
      %v1680 = vpop.f32.mrf.mxu0
      %1681 = vmatprep.mubr.f32.mxu0 0.0
      %1682 = vmatmul.mubr.f32.gmra.mxu0 %v1579
      %v1683 = vpop.f32.mrf.mxu0
      %v1684 = vadd.f32 0.0, %v1683
      %v1685 = vpop.f32.mrf.mxu0
      %1686 = vmatprep.mubr.f32.mxu0 0.0
      %1687 = vmatmul.mubr.f32.gmra.mxu0 %v1581
      %v1688 = vpop.f32.mrf.mxu0
      %v1689 = vadd.f32 0.0, %v1688
      %v1690 = vpop.f32.mrf.mxu0
      %1691 = vmatprep.mubr.f32.mxu0 0.0
      %1692 = vmatmul.mubr.f32.gmra.mxu0 %v1583
      %v1693 = vpop.f32.mrf.mxu0
      %v1694 = vadd.f32 0.0, %v1693
      %v1695 = vpop.f32.mrf.mxu0
      %1696 = vmatprep.mubr.f32.mxu0 0.0
      %1697 = vmatmul.mubr.f32.gmra.mxu0 %v1585
      %v1698 = vpop.f32.mrf.mxu0
      %v1699 = vadd.f32 0.0, %v1698
      %v1700 = vpop.f32.mrf.mxu0
      %1701 = vmatprep.mubr.f32.mxu0 0.0
      %1702 = vmatmul.mubr.f32.gmra.mxu0 %v1587
      %v1703 = vpop.f32.mrf.mxu0
      %v1704 = vadd.f32 0.0, %v1703
      %v1705 = vpop.f32.mrf.mxu0
      %1706 = vdwg.mxu0
      %v1707 = vadd.f32 %v1543, %v1664
      %v1708 = vadd.f32 %v1544, %v1669
      %v1709 = vadd.f32 %v1545, %v1674
      %v1710 = vadd.f32 %v1546, %v1679
      %v1711 = vadd.f32 %v1547, %v1684
      %v1712 = vadd.f32 %v1548, %v1689
      %v1713 = vadd.f32 %v1549, %v1694
      %v1714 = vadd.f32 %v1550, %v1699
      %v1715 = vadd.f32 %v1551, %v1704
      %v1716 = vld [vmem:[%s5] sm:$0x1]
      %v1718 = vlaneseq
      %v1719 = vshrl.u32 %v1718, 7
      %v1720 = vsub.s32 0, %v1719
      %v1721 = vrot.slane %v1716, %v1720
      %v1723 = vadd.f32 %v1707, %v1721
      %v1724 = vadd.f32 %v1708, %v1721
      %v1725 = vadd.f32 %v1709, %v1721
      %v1726 = vadd.f32 %v1710, %v1721
      %v1727 = vadd.f32 %v1711, %v1721
      %v1728 = vadd.f32 %v1712, %v1721
      %v1729 = vadd.f32 %v1713, %v1721
      %v1730 = vadd.f32 %v1714, %v1721
      %v1731 = vadd.f32 %v1715, %v1721
      %vm1732 = vcmask 261120
      %1733 = vst.msk [vmem:[%s348] sm:$0xff] %vm1732, %v1723
      %s1734 = scalar_lea.vmem %s348, 8
      %vm1735 = vcmask 261121
      %1736 = vst.msk [vmem:[%s1734 - $0x1] sm:$0xfe] %vm1735, %v1724
      %vm1737 = vcmask 253952
      %1738 = vst.msk [vmem:[%s1734 + $0x7] sm:$0x1] %vm1737, %v1725
      %s1739 = scalar_lea.vmem %s348, 16
      %vm1740 = vcmask 261122
      %1741 = vst.msk [vmem:[%s1739 - $0x2] sm:$0xfc] %vm1740, %v1725
      %vm1742 = vcmask 254976
      %1743 = vst.msk [vmem:[%s1739 + $0x6] sm:$0x3] %vm1742, %v1726
      %s1744 = scalar_lea.vmem %s348, 24
      %vm1745 = vcmask 261123
      %1746 = vst.msk [vmem:[%s1744 - $0x3] sm:$0xf8] %vm1745, %v1726
      %vm1747 = vcmask 256000
      %1748 = vst.msk [vmem:[%s1744 + $0x5] sm:$0x7] %vm1747, %v1727
      %s1749 = scalar_lea.vmem %s348, 32
      %vm1750 = vcmask 261124
      %1751 = vst.msk [vmem:[%s1749 - $0x4] sm:$0xf0] %vm1750, %v1727
      %vm1752 = vcmask 257024
      %1753 = vst.msk [vmem:[%s1749 + $0x4] sm:$0xf] %vm1752, %v1728
      %s1754 = scalar_lea.vmem %s348, 40
      %vm1755 = vcmask 261125
      %1756 = vst.msk [vmem:[%s1754 - $0x5] sm:$0xe0] %vm1755, %v1728
      %vm1757 = vcmask 258048
      %1758 = vst.msk [vmem:[%s1754 + $0x3] sm:$0x1f] %vm1757, %v1729
      %s1759 = scalar_lea.vmem %s348, 48
      %vm1760 = vcmask 261126
      %1761 = vst.msk [vmem:[%s1759 - $0x6] sm:$0xc0] %vm1760, %v1729
      %vm1762 = vcmask 259072
      %1763 = vst.msk [vmem:[%s1759 + $0x2] sm:$0x3f] %vm1762, %v1730
      %s1764 = scalar_lea.vmem %s348, 56
      %vm1765 = vcmask 261127
      %1766 = vst.msk [vmem:[%s1764 - $0x7] sm:$0x80] %vm1765, %v1730
      %vm1767 = vcmask 260096
      %1768 = vst.msk [vmem:[%s1764 + $0x1] sm:$0x7f] %vm1767, %v1731
      %s1769 = smul.u32 8, %s22
      %p1770 = scmp.lt.s32.totalorder %s21, 1
      %s1771 = scalar_select %p1770, %s21, 1
      %p1772 = scmp.lt.s32.totalorder %s1769, 7
      %s1773 = scalar_select %p1772, %s1769, 7
      %s1774 = smul.addr %s1771, 8
      %s1775 = sadd.s32 %s1773, %s1774
      %s1776 = smul.addr %s1775, 8
      %s1777 = scalar_lea.vmem %s6, %s1776
      // Predicated region
      $region45: #{downsample_forward.1} parent=43 // pred_check
        %p1778 = pneg %p197
      $region46: #{downsample_forward.1} parent=43 // pred_check_branch
        %1780 = sbr.rel (%p1778) target = $region48
      $region47: #{downsample_forward.1} parent=43 // pred_region
        %s1781 = smul.u32 8, %s22
      $region48: #{downsample_forward.1} parent=43 // pred_fallthru
        _
    $region44: #{downsample_forward.1} parent=5 // pred_fallthru
      _
    %p1782 = scmp.le.s32.totalorder 2, %s12
    // Predicated region
    $region49: #{downsample_forward.1} parent=5 // pred_check
      %p1783 = pneg %p1782
    $region50: #{downsample_forward.1} parent=5 // pred_check_branch
      %1785 = sbr.rel (%p1783) target = $region52
    $region51: #{downsample_forward.1} parent=5 // pred_region
      %s1786 = ssub.s32 %s12, 2
      // Predicated region
      $region53: #{downsample_forward.1} parent=51 // pred_check
        %p1787 = pneg %p203
      $region54: #{downsample_forward.1} parent=51 // pred_check_branch
        %1789 = sbr.rel (%p1787) target = $region56
      $region55: #{downsample_forward.1} parent=51 // pred_region
        %s1790 = smul.u32 8, %s24
        %p1791 = scmp.lt.s32.totalorder %s23, 1
        %s1792 = scalar_select %p1791, %s23, 1
        %p1793 = scmp.lt.s32.totalorder %s1790, 7
        %s1794 = scalar_select %p1793, %s1790, 7
        %s1795 = smul.addr %s1792, 8
        %s1796 = sadd.s32 %s1794, %s1795
        %s1797 = smul.addr %s1796, 8
        %s1798 = scalar_lea.vmem %s6, %s1797
      $region56: #{downsample_forward.1} parent=51 // pred_fallthru
        _
    $region52: #{downsample_forward.1} parent=5 // pred_fallthru
      _
  $region6: #{downsample_forward.1} parent=0 // loop_footer
    %s16 = sadd.s32 1, %s12
  $region7: #{downsample_forward.1} parent=0 // loop_footer_branch
    %11 = sbr.rel target = $region3
  $region8: #{downsample_forward.1} parent=0 // loop_exit
    _

</llo_original>
